<compile_context>
chip_gen: v6e
topology: v6e:2x2x1
jax: 0.10.0
libtpu: 0.0.40
codegen_flags: <defaults>
</compile_context>

<pallas_src>
import jax
import jax.numpy as jnp
from jax import lax
from jax.experimental import pallas as pl
from jax.experimental.pallas import tpu as pltpu


# ----------------------------- Pallas kernel --------------------------------
def bilstm_kernel(emb_ref,      # (T*B, E)   time-major flattened embeddings
                  wih_ref,      # (1, E, 4H) this direction's input weights
                  whh_ref,      # (1, H, 4H) this direction's hidden weights
                  b_ref,        # (1, 1, 4H) combined bias (b_ih + b_hh)
                  fcw_ref,      # (1, H, C)  this direction's half of fc
                  out_ref,      # (1, T, B, C)
                  xscr_ref,     # scratch (T, B, 4H): precomputed input proj
                  hscr_ref):    # scratch (T, B, H) : collected hidden states
    d = pl.program_id(0)                  # 0 = forward, 1 = backward
    T, B, H = hscr_ref.shape
    H4 = 4 * H

    # ---- one-shot input projection for this direction (off the serial path)
    wih = wih_ref[0]                                            # (E, 4H)
    x_all = jnp.dot(emb_ref[...], wih,
                    preferred_element_type=jnp.float32)         # (T*B, 4H)
    xscr_ref[...] = x_all.reshape(T, B, H4)

    # ---- hoist loop-invariant loads
    whh = whh_ref[0]                                            # (H, 4H)
    bias = b_ref[0]                                             # (1, 4H)

    h0 = jnp.zeros((B, H), jnp.float32)
    c0 = jnp.zeros((B, H), jnp.float32)

    def step(k, carry):
        h, c = carry
        # forward walks t = 0..T-1, backward walks t = T-1..0
        t = jnp.where(d == 0, k, T - 1 - k)
        gates = (xscr_ref[t]
                 + jnp.dot(h, whh, preferred_element_type=jnp.float32)
                 + bias)                                        # (B, 4H)
        sig = jax.nn.sigmoid(gates)                             # full-vreg EUP
        th = jnp.tanh(gates)                                    # full-vreg EUP
        i = sig[:, 0 * H:1 * H]
        f = sig[:, 1 * H:2 * H]
        g = th[:, 2 * H:3 * H]
        o = sig[:, 3 * H:4 * H]
        c_new = f * c + i * g
        h_new = o * jnp.tanh(c_new)
        hscr_ref[t] = h_new                                     # collect h_t
        return (h_new, c_new)

    # short static trip-count: fully unroll for cross-iteration scheduling
    lax.fori_loop(0, T, step, (h0, c0), unroll=True)

    # ---- fused output projection: one GEMM + one bulk store per direction
    fcw = fcw_ref[0]                                            # (H, C)
    h_all = hscr_ref[...].reshape(T * B, H)
    out = jnp.dot(h_all, fcw, preferred_element_type=jnp.float32)
    out_ref[0] = out.reshape(T, B, out.shape[-1]).astype(out_ref.dtype)


# ------------------------------ wrapper --------------------------------------
def bilstm_forward(batch_data, params):
    """batch_data: int32 (B, T) token ids -> (B, T, class_num) float32."""
    (emb_table,
     w_ih_f, w_hh_f, b_ih_f, b_hh_f,
     w_ih_b, w_hh_b, b_ih_b, b_hh_b,
     fc_w, fc_b) = params

    B, T = batch_data.shape
    E = emb_table.shape[1]
    H = w_hh_f.shape[1]
    C = fc_w.shape[0]
    B_pad = max(8, ((B + 7) // 8) * 8)          # pad batch to sublane multiple

    # glue: embedding gather + time-major layout (+ batch padding)
    emb = jnp.take(emb_table, batch_data, axis=0).astype(jnp.float32)  # (B,T,E)
    emb_t = jnp.transpose(emb, (1, 0, 2))                              # (T,B,E)
    if B_pad != B:
        emb_t = jnp.pad(emb_t, ((0, 0), (0, B_pad - B), (0, 0)))
    emb_flat = emb_t.reshape(T * B_pad, E)                             # (T*B,E)

    # stack per-direction weights so the kernel grid indexes direction
    wih = jnp.stack([w_ih_f.T, w_ih_b.T])                 # (2, E, 4H)
    whh = jnp.stack([w_hh_f.T, w_hh_b.T])                 # (2, H, 4H)
    b = jnp.stack([(b_ih_f + b_hh_f)[None, :],
                   (b_ih_b + b_hh_b)[None, :]])           # (2, 1, 4H)
    fcw = jnp.stack([fc_w[:, :H].T, fc_w[:, H:].T])       # (2, H, C)
    # TODO(synk): for v6e/v7x, cast wih/whh/fcw and emb_flat to bf16 (keep h/c
    # and accumulation in f32) once the comparison tolerance allows it.

    grid_spec = pltpu.PrefetchScalarGridSpec(
        num_scalar_prefetch=0,
        grid=(2,),                                        # direction
        in_specs=[
            pl.BlockSpec((T * B_pad, E), lambda d: (0, 0)),
            pl.BlockSpec((1, E, 4 * H), lambda d: (d, 0, 0)),
            pl.BlockSpec((1, H, 4 * H), lambda d: (d, 0, 0)),
            pl.BlockSpec((1, 1, 4 * H), lambda d: (d, 0, 0)),
            pl.BlockSpec((1, H, C), lambda d: (d, 0, 0)),
        ],
        out_specs=pl.BlockSpec((1, T, B_pad, C), lambda d: (d, 0, 0, 0)),
        scratch_shapes=[pltpu.VMEM((T, B_pad, 4 * H), jnp.float32),
                        pltpu.VMEM((T, B_pad, H), jnp.float32)],
    )

    # TODO(synk): for large T/B the whole activation should be streamed with
    # double-buffered (chunk_T, B, E) DMA tiles instead of full VMEM residency
    # (matters first on v7x with 64 MiB VMEM).
    out2 = pl.pallas_call(
        bilstm_kernel,
        out_shape=jax.ShapeDtypeStruct((2, T, B_pad, C), jnp.float32),
        grid_spec=grid_spec,
        compiler_params=pltpu.CompilerParams(
            dimension_semantics=("parallel",)),
    )(emb_flat, wih, whh, b, fcw)

    out_t = out2[0] + out2[1] + fc_b                      # (T, B_pad, C)
    return jnp.transpose(out_t[:, :B, :], (1, 0, 2))      # (B, T, C)


# --------------------------- pure-JAX reference -------------------------------
def bilstm_reference(batch_data, params):
    (emb_table,
     w_ih_f, w_hh_f, b_ih_f, b_hh_f,
     w_ih_b, w_hh_b, b_ih_b, b_hh_b,
     fc_w, fc_b) = params
    B, T = batch_data.shape
    H = w_hh_f.shape[1]
    emb = jnp.take(emb_table, batch_data, axis=0).astype(jnp.float32)  # (B,T,E)
    xs = jnp.transpose(emb, (1, 0, 2))                                  # (T,B,E)

    def run_dir(xs, w_ih, w_hh, b_ih, b_hh, reverse):
        def step(carry, x):
            h, c = carry
            gates = x @ w_ih.T + h @ w_hh.T + b_ih + b_hh
            i, f, g, o = jnp.split(gates, 4, axis=-1)
            c = jax.nn.sigmoid(f) * c + jax.nn.sigmoid(i) * jnp.tanh(g)
            h = jax.nn.sigmoid(o) * jnp.tanh(c)
            return (h, c), h
        h0 = jnp.zeros((B, H), jnp.float32)
        c0 = jnp.zeros((B, H), jnp.float32)
        seq = xs[::-1] if reverse else xs
        _, hs = lax.scan(step, (h0, c0), seq)
        return hs[::-1] if reverse else hs                              # (T,B,H)

    hf = run_dir(xs, w_ih_f, w_hh_f, b_ih_f, b_hh_f, reverse=False)
    hb = run_dir(xs, w_ih_b, w_hh_b, b_ih_b, b_hh_b, reverse=True)
    out = jnp.concatenate([hf, hb], axis=-1) @ fc_w.T + fc_b            # (T,B,C)
    return jnp.transpose(out, (1, 0, 2))


# ------------------------------- main -----------------------------------------
if __name__ == "__main__":
    # Small, LSTM-friendly shapes implied by the module.
    corpus_num, embedding_num, hidden_num, class_num = 50, 32, 32, 8
    B, T = 2, 8

    key = jax.random.PRNGKey(0)
    keys = jax.random.split(key, 12)
    s = 0.1
    emb_table = s * jax.random.normal(keys[0], (corpus_num, embedding_num), jnp.float32)
    w_ih_f = s * jax.random.normal(keys[1], (4 * hidden_num, embedding_num), jnp.float32)
    w_hh_f = s * jax.random.normal(keys[2], (4 * hidden_num, hidden_num), jnp.float32)
    b_ih_f = s * jax.random.normal(keys[3], (4 * hidden_num,), jnp.float32)
    b_hh_f = s * jax.random.normal(keys[4], (4 * hidden_num,), jnp.float32)
    w_ih_b = s * jax.random.normal(keys[5], (4 * hidden_num, embedding_num), jnp.float32)
    w_hh_b = s * jax.random.normal(keys[6], (4 * hidden_num, hidden_num), jnp.float32)
    b_ih_b = s * jax.random.normal(keys[7], (4 * hidden_num,), jnp.float32)
    b_hh_b = s * jax.random.normal(keys[8], (4 * hidden_num,), jnp.float32)
    fc_w = s * jax.random.normal(keys[9], (class_num, 2 * hidden_num), jnp.float32)
    fc_b = s * jax.random.normal(keys[10], (class_num,), jnp.float32)

    params = (emb_table,
              w_ih_f, w_hh_f, b_ih_f, b_hh_f,
              w_ih_b, w_hh_b, b_ih_b, b_hh_b,
              fc_w, fc_b)

    batch_data = jax.random.randint(keys[11], (B, T), 0, corpus_num, jnp.int32)

    out = jax.block_until_ready(bilstm_forward(batch_data, params))
    ref = jax.block_until_ready(bilstm_reference(batch_data, params))

    assert out.shape == (B, T, class_num), out.shape
    assert jnp.allclose(out, ref, atol=1e-4, rtol=1e-4), \
        f"max abs err {jnp.max(jnp.abs(out - ref))}"

    print("KERNEL_OK")
</pallas_src>

<mosaic_0001>
module attributes {stable_mosaic.version = 11 : i64} {
  func.func @bilstm_kernel(%arg0: i32, %arg1: memref<64x32xf32, #tpu.memory_space<vmem>>, %arg2: memref<1x32x128xf32, #tpu.memory_space<vmem>>, %arg3: memref<1x32x128xf32, #tpu.memory_space<vmem>>, %arg4: memref<1x1x128xf32, #tpu.memory_space<vmem>>, %arg5: memref<1x32x8xf32, #tpu.memory_space<vmem>>, %arg6: memref<1x8x8x8xf32, #tpu.memory_space<vmem>>, %arg7: memref<8x8x128xf32, #tpu.memory_space<vmem>>, %arg8: memref<8x8x32xf32, #tpu.memory_space<vmem>>) attributes {dimension_semantics = [#tpu.dimension_semantics<parallel>], iteration_bounds = array<i64: 2>, scalar_prefetch = 0 : i64, scratch_operands = 2 : i64, tpu.core_type = #tpu.core_type<tc>, window_params = [{pipeline_mode = #tpu.pipeline_mode<synchronous>, transform_indices = @transform_0, window_bounds = array<i64: 64, 32>}, {transform_indices = @transform_1, window_bounds = array<i64: 1, 32, 128>}, {transform_indices = @transform_2, window_bounds = array<i64: 1, 32, 128>}, {transform_indices = @transform_3, window_bounds = array<i64: 1, 1, 128>}, {transform_indices = @transform_4, window_bounds = array<i64: 1, 32, 8>}, {transform_indices = @transform_5, window_bounds = array<i64: 1, 8, 8, 8>}]} {
    %c0 = arith.constant 0 : index
    %c0_0 = arith.constant 0 : index
    %c0_1 = arith.constant 0 : index
    %0 = vector.load %arg2[%c0, %c0_0, %c0_1] : memref<1x32x128xf32, #tpu.memory_space<vmem>>, vector<1x32x128xf32>
    %1 = vector.shape_cast %0 : vector<1x32x128xf32> to vector<32x128xf32>
    %c0_2 = arith.constant 0 : index
    %c0_3 = arith.constant 0 : index
    %2 = vector.load %arg1[%c0_2, %c0_3] : memref<64x32xf32, #tpu.memory_space<vmem>>, vector<64x32xf32>
    %cst = arith.constant dense<0.000000e+00> : vector<64x128xf32>
    %3 = tpu.matmul %2, %1, %cst {dimension_numbers = #tpu.dot_dimension_numbers<[1], [0], [0], [1], [0, 0, 1, 1], [], []>} : vector<64x32xf32>, vector<32x128xf32>, vector<64x128xf32> -> vector<64x128xf32>
    %4 = vector.shape_cast %3 : vector<64x128xf32> to vector<8x8x128xf32>
    %c0_4 = arith.constant 0 : index
    %c0_5 = arith.constant 0 : index
    %c0_6 = arith.constant 0 : index
    %5 = vector.load %arg7[%c0_4, %c0_5, %c0_6] : memref<8x8x128xf32, #tpu.memory_space<vmem>>, vector<8x8x128xf32>
    tpu.vector_store %arg7[%c0_4, %c0_5, %c0_6], %4 {strides = array<i32>} : memref<8x8x128xf32, #tpu.memory_space<vmem>>, vector<8x8x128xf32>,
    %c0_7 = arith.constant 0 : index
    %c0_8 = arith.constant 0 : index
    %c0_9 = arith.constant 0 : index
    %6 = vector.load %arg3[%c0_7, %c0_8, %c0_9] : memref<1x32x128xf32, #tpu.memory_space<vmem>>, vector<1x32x128xf32>
    %7 = vector.shape_cast %6 : vector<1x32x128xf32> to vector<32x128xf32>
    %c0_10 = arith.constant 0 : index
    %c0_11 = arith.constant 0 : index
    %c0_12 = arith.constant 0 : index
    %8 = vector.load %arg4[%c0_10, %c0_11, %c0_12] : memref<1x1x128xf32, #tpu.memory_space<vmem>>, vector<1x1x128xf32>
    %9 = vector.shape_cast %8 : vector<1x1x128xf32> to vector<1x128xf32>
    %cst_13 = arith.constant 0.000000e+00 : f32
    %10 = vector.broadcast %cst_13 : f32 to vector<8x32xf32>
    %cst_14 = arith.constant 0.000000e+00 : f32
    %11 = vector.broadcast %cst_14 : f32 to vector<8x32xf32>
    %c0_i32 = arith.constant 0 : i32
    %c0_i32_15 = arith.constant 0 : i32
    %12 = arith.cmpi eq, %arg0, %c0_i32_15 : i32
    %c7_i32 = arith.constant 7 : i32
    %13 = arith.subi %c7_i32, %c0_i32 : i32
    %14 = arith.select %12, %c0_i32, %13 : i32
    %15 = arith.index_cast %14 : i32 to index
    %c0_16 = arith.constant 0 : index
    %c0_17 = arith.constant 0 : index
    %16 = vector.load %arg7[%15, %c0_16, %c0_17] : memref<8x8x128xf32, #tpu.memory_space<vmem>>, vector<1x8x128xf32>
    %17 = vector.shape_cast %16 : vector<1x8x128xf32> to vector<8x128xf32>
    %cst_18 = arith.constant dense<0.000000e+00> : vector<8x128xf32>
    %18 = tpu.matmul %10, %7, %cst_18 {dimension_numbers = #tpu.dot_dimension_numbers<[1], [0], [0], [1], [0, 0, 1, 1], [], []>} : vector<8x32xf32>, vector<32x128xf32>, vector<8x128xf32> -> vector<8x128xf32>
    %19 = arith.addf %17, %18 : vector<8x128xf32>
    %20 = vector.broadcast %9 : vector<1x128xf32> to vector<8x128xf32>
    %21 = arith.addf %19, %20 : vector<8x128xf32>
    %22 = arith.negf %21 : vector<8x128xf32>
    %23 = math.exp %22 : vector<8x128xf32>
    %cst_19 = arith.constant 1.000000e+00 : f32
    %24 = vector.broadcast %cst_19 : f32 to vector<8x128xf32>
    %25 = arith.addf %24, %23 : vector<8x128xf32>
    %26 = arith.divf %24, %25 : vector<8x128xf32>
    %27 = math.tanh %21 : vector<8x128xf32>
    %28 = vector.extract_strided_slice %26 {offsets = [0, 0], sizes = [8, 32], strides = [1, 1]} : vector<8x128xf32> to vector<8x32xf32>
    %29 = vector.extract_strided_slice %26 {offsets = [0, 32], sizes = [8, 32], strides = [1, 1]} : vector<8x128xf32> to vector<8x32xf32>
    %30 = vector.extract_strided_slice %27 {offsets = [0, 64], sizes = [8, 32], strides = [1, 1]} : vector<8x128xf32> to vector<8x32xf32>
    %31 = vector.extract_strided_slice %26 {offsets = [0, 96], sizes = [8, 32], strides = [1, 1]} : vector<8x128xf32> to vector<8x32xf32>
    %32 = arith.mulf %29, %11 : vector<8x32xf32>
    %33 = arith.mulf %28, %30 : vector<8x32xf32>
    %34 = arith.addf %32, %33 : vector<8x32xf32>
    %35 = math.tanh %34 : vector<8x32xf32>
    %36 = arith.mulf %31, %35 : vector<8x32xf32>
    %37 = arith.index_cast %14 : i32 to index
    %c0_20 = arith.constant 0 : index
    %c0_21 = arith.constant 0 : index
    %38 = vector.load %arg8[%37, %c0_20, %c0_21] : memref<8x8x32xf32, #tpu.memory_space<vmem>>, vector<1x8x32xf32>
    %39 = vector.shape_cast %38 : vector<1x8x32xf32> to vector<8x32xf32>
    %40 = vector.shape_cast %36 : vector<8x32xf32> to vector<1x8x32xf32>
    tpu.vector_store %arg8[%37, %c0_20, %c0_21], %40 {strides = array<i32>} : memref<8x8x32xf32, #tpu.memory_space<vmem>>, vector<1x8x32xf32>,
    %c1_i32 = arith.constant 1 : i32
    %c0_i32_22 = arith.constant 0 : i32
    %41 = arith.cmpi eq, %arg0, %c0_i32_22 : i32
    %c7_i32_23 = arith.constant 7 : i32
    %42 = arith.subi %c7_i32_23, %c1_i32 : i32
    %43 = arith.select %41, %c1_i32, %42 : i32
    %44 = arith.index_cast %43 : i32 to index
    %c0_24 = arith.constant 0 : index
    %c0_25 = arith.constant 0 : index
    %45 = vector.load %arg7[%44, %c0_24, %c0_25] : memref<8x8x128xf32, #tpu.memory_space<vmem>>, vector<1x8x128xf32>
    %46 = vector.shape_cast %45 : vector<1x8x128xf32> to vector<8x128xf32>
    %cst_26 = arith.constant dense<0.000000e+00> : vector<8x128xf32>
    %47 = tpu.matmul %36, %7, %cst_26 {dimension_numbers = #tpu.dot_dimension_numbers<[1], [0], [0], [1], [0, 0, 1, 1], [], []>} : vector<8x32xf32>, vector<32x128xf32>, vector<8x128xf32> -> vector<8x128xf32>
    %48 = arith.addf %46, %47 : vector<8x128xf32>
    %49 = vector.broadcast %9 : vector<1x128xf32> to vector<8x128xf32>
    %50 = arith.addf %48, %49 : vector<8x128xf32>
    %51 = arith.negf %50 : vector<8x128xf32>
    %52 = math.exp %51 : vector<8x128xf32>
    %cst_27 = arith.constant 1.000000e+00 : f32
    %53 = vector.broadcast %cst_27 : f32 to vector<8x128xf32>
    %54 = arith.addf %53, %52 : vector<8x128xf32>
    %55 = arith.divf %53, %54 : vector<8x128xf32>
    %56 = math.tanh %50 : vector<8x128xf32>
    %57 = vector.extract_strided_slice %55 {offsets = [0, 0], sizes = [8, 32], strides = [1, 1]} : vector<8x128xf32> to vector<8x32xf32>
    %58 = vector.extract_strided_slice %55 {offsets = [0, 32], sizes = [8, 32], strides = [1, 1]} : vector<8x128xf32> to vector<8x32xf32>
    %59 = vector.extract_strided_slice %56 {offsets = [0, 64], sizes = [8, 32], strides = [1, 1]} : vector<8x128xf32> to vector<8x32xf32>
    %60 = vector.extract_strided_slice %55 {offsets = [0, 96], sizes = [8, 32], strides = [1, 1]} : vector<8x128xf32> to vector<8x32xf32>
    %61 = arith.mulf %58, %34 : vector<8x32xf32>
    %62 = arith.mulf %57, %59 : vector<8x32xf32>
    %63 = arith.addf %61, %62 : vector<8x32xf32>
    %64 = math.tanh %63 : vector<8x32xf32>
    %65 = arith.mulf %60, %64 : vector<8x32xf32>
    %66 = arith.index_cast %43 : i32 to index
    %c0_28 = arith.constant 0 : index
    %c0_29 = arith.constant 0 : index
    %67 = vector.load %arg8[%66, %c0_28, %c0_29] : memref<8x8x32xf32, #tpu.memory_space<vmem>>, vector<1x8x32xf32>
    %68 = vector.shape_cast %67 : vector<1x8x32xf32> to vector<8x32xf32>
    %69 = vector.shape_cast %65 : vector<8x32xf32> to vector<1x8x32xf32>
    tpu.vector_store %arg8[%66, %c0_28, %c0_29], %69 {strides = array<i32>} : memref<8x8x32xf32, #tpu.memory_space<vmem>>, vector<1x8x32xf32>,
    %c2_i32 = arith.constant 2 : i32
    %c0_i32_30 = arith.constant 0 : i32
    %70 = arith.cmpi eq, %arg0, %c0_i32_30 : i32
    %c7_i32_31 = arith.constant 7 : i32
    %71 = arith.subi %c7_i32_31, %c2_i32 : i32
    %72 = arith.select %70, %c2_i32, %71 : i32
    %73 = arith.index_cast %72 : i32 to index
    %c0_32 = arith.constant 0 : index
    %c0_33 = arith.constant 0 : index
    %74 = vector.load %arg7[%73, %c0_32, %c0_33] : memref<8x8x128xf32, #tpu.memory_space<vmem>>, vector<1x8x128xf32>
    %75 = vector.shape_cast %74 : vector<1x8x128xf32> to vector<8x128xf32>
    %cst_34 = arith.constant dense<0.000000e+00> : vector<8x128xf32>
    %76 = tpu.matmul %65, %7, %cst_34 {dimension_numbers = #tpu.dot_dimension_numbers<[1], [0], [0], [1], [0, 0, 1, 1], [], []>} : vector<8x32xf32>, vector<32x128xf32>, vector<8x128xf32> -> vector<8x128xf32>
    %77 = arith.addf %75, %76 : vector<8x128xf32>
    %78 = vector.broadcast %9 : vector<1x128xf32> to vector<8x128xf32>
    %79 = arith.addf %77, %78 : vector<8x128xf32>
    %80 = arith.negf %79 : vector<8x128xf32>
    %81 = math.exp %80 : vector<8x128xf32>
    %cst_35 = arith.constant 1.000000e+00 : f32
    %82 = vector.broadcast %cst_35 : f32 to vector<8x128xf32>
    %83 = arith.addf %82, %81 : vector<8x128xf32>
    %84 = arith.divf %82, %83 : vector<8x128xf32>
    %85 = math.tanh %79 : vector<8x128xf32>
    %86 = vector.extract_strided_slice %84 {offsets = [0, 0], sizes = [8, 32], strides = [1, 1]} : vector<8x128xf32> to vector<8x32xf32>
    %87 = vector.extract_strided_slice %84 {offsets = [0, 32], sizes = [8, 32], strides = [1, 1]} : vector<8x128xf32> to vector<8x32xf32>
    %88 = vector.extract_strided_slice %85 {offsets = [0, 64], sizes = [8, 32], strides = [1, 1]} : vector<8x128xf32> to vector<8x32xf32>
    %89 = vector.extract_strided_slice %84 {offsets = [0, 96], sizes = [8, 32], strides = [1, 1]} : vector<8x128xf32> to vector<8x32xf32>
    %90 = arith.mulf %87, %63 : vector<8x32xf32>
    %91 = arith.mulf %86, %88 : vector<8x32xf32>
    %92 = arith.addf %90, %91 : vector<8x32xf32>
    %93 = math.tanh %92 : vector<8x32xf32>
    %94 = arith.mulf %89, %93 : vector<8x32xf32>
    %95 = arith.index_cast %72 : i32 to index
    %c0_36 = arith.constant 0 : index
    %c0_37 = arith.constant 0 : index
    %96 = vector.load %arg8[%95, %c0_36, %c0_37] : memref<8x8x32xf32, #tpu.memory_space<vmem>>, vector<1x8x32xf32>
    %97 = vector.shape_cast %96 : vector<1x8x32xf32> to vector<8x32xf32>
    %98 = vector.shape_cast %94 : vector<8x32xf32> to vector<1x8x32xf32>
    tpu.vector_store %arg8[%95, %c0_36, %c0_37], %98 {strides = array<i32>} : memref<8x8x32xf32, #tpu.memory_space<vmem>>, vector<1x8x32xf32>,
    %c3_i32 = arith.constant 3 : i32
    %c0_i32_38 = arith.constant 0 : i32
    %99 = arith.cmpi eq, %arg0, %c0_i32_38 : i32
    %c7_i32_39 = arith.constant 7 : i32
    %100 = arith.subi %c7_i32_39, %c3_i32 : i32
    %101 = arith.select %99, %c3_i32, %100 : i32
    %102 = arith.index_cast %101 : i32 to index
    %c0_40 = arith.constant 0 : index
    %c0_41 = arith.constant 0 : index
    %103 = vector.load %arg7[%102, %c0_40, %c0_41] : memref<8x8x128xf32, #tpu.memory_space<vmem>>, vector<1x8x128xf32>
    %104 = vector.shape_cast %103 : vector<1x8x128xf32> to vector<8x128xf32>
    %cst_42 = arith.constant dense<0.000000e+00> : vector<8x128xf32>
    %105 = tpu.matmul %94, %7, %cst_42 {dimension_numbers = #tpu.dot_dimension_numbers<[1], [0], [0], [1], [0, 0, 1, 1], [], []>} : vector<8x32xf32>, vector<32x128xf32>, vector<8x128xf32> -> vector<8x128xf32>
    %106 = arith.addf %104, %105 : vector<8x128xf32>
    %107 = vector.broadcast %9 : vector<1x128xf32> to vector<8x128xf32>
    %108 = arith.addf %106, %107 : vector<8x128xf32>
    %109 = arith.negf %108 : vector<8x128xf32>
    %110 = math.exp %109 : vector<8x128xf32>
    %cst_43 = arith.constant 1.000000e+00 : f32
    %111 = vector.broadcast %cst_43 : f32 to vector<8x128xf32>
    %112 = arith.addf %111, %110 : vector<8x128xf32>
    %113 = arith.divf %111, %112 : vector<8x128xf32>
    %114 = math.tanh %108 : vector<8x128xf32>
    %115 = vector.extract_strided_slice %113 {offsets = [0, 0], sizes = [8, 32], strides = [1, 1]} : vector<8x128xf32> to vector<8x32xf32>
    %116 = vector.extract_strided_slice %113 {offsets = [0, 32], sizes = [8, 32], strides = [1, 1]} : vector<8x128xf32> to vector<8x32xf32>
    %117 = vector.extract_strided_slice %114 {offsets = [0, 64], sizes = [8, 32], strides = [1, 1]} : vector<8x128xf32> to vector<8x32xf32>
    %118 = vector.extract_strided_slice %113 {offsets = [0, 96], sizes = [8, 32], strides = [1, 1]} : vector<8x128xf32> to vector<8x32xf32>
    %119 = arith.mulf %116, %92 : vector<8x32xf32>
    %120 = arith.mulf %115, %117 : vector<8x32xf32>
    %121 = arith.addf %119, %120 : vector<8x32xf32>
    %122 = math.tanh %121 : vector<8x32xf32>
    %123 = arith.mulf %118, %122 : vector<8x32xf32>
    %124 = arith.index_cast %101 : i32 to index
    %c0_44 = arith.constant 0 : index
    %c0_45 = arith.constant 0 : index
    %125 = vector.load %arg8[%124, %c0_44, %c0_45] : memref<8x8x32xf32, #tpu.memory_space<vmem>>, vector<1x8x32xf32>
    %126 = vector.shape_cast %125 : vector<1x8x32xf32> to vector<8x32xf32>
    %127 = vector.shape_cast %123 : vector<8x32xf32> to vector<1x8x32xf32>
    tpu.vector_store %arg8[%124, %c0_44, %c0_45], %127 {strides = array<i32>} : memref<8x8x32xf32, #tpu.memory_space<vmem>>, vector<1x8x32xf32>,
    %c4_i32 = arith.constant 4 : i32
    %c0_i32_46 = arith.constant 0 : i32
    %128 = arith.cmpi eq, %arg0, %c0_i32_46 : i32
    %c7_i32_47 = arith.constant 7 : i32
    %129 = arith.subi %c7_i32_47, %c4_i32 : i32
    %130 = arith.select %128, %c4_i32, %129 : i32
    %131 = arith.index_cast %130 : i32 to index
    %c0_48 = arith.constant 0 : index
    %c0_49 = arith.constant 0 : index
    %132 = vector.load %arg7[%131, %c0_48, %c0_49] : memref<8x8x128xf32, #tpu.memory_space<vmem>>, vector<1x8x128xf32>
    %133 = vector.shape_cast %132 : vector<1x8x128xf32> to vector<8x128xf32>
    %cst_50 = arith.constant dense<0.000000e+00> : vector<8x128xf32>
    %134 = tpu.matmul %123, %7, %cst_50 {dimension_numbers = #tpu.dot_dimension_numbers<[1], [0], [0], [1], [0, 0, 1, 1], [], []>} : vector<8x32xf32>, vector<32x128xf32>, vector<8x128xf32> -> vector<8x128xf32>
    %135 = arith.addf %133, %134 : vector<8x128xf32>
    %136 = vector.broadcast %9 : vector<1x128xf32> to vector<8x128xf32>
    %137 = arith.addf %135, %136 : vector<8x128xf32>
    %138 = arith.negf %137 : vector<8x128xf32>
    %139 = math.exp %138 : vector<8x128xf32>
    %cst_51 = arith.constant 1.000000e+00 : f32
    %140 = vector.broadcast %cst_51 : f32 to vector<8x128xf32>
    %141 = arith.addf %140, %139 : vector<8x128xf32>
    %142 = arith.divf %140, %141 : vector<8x128xf32>
    %143 = math.tanh %137 : vector<8x128xf32>
    %144 = vector.extract_strided_slice %142 {offsets = [0, 0], sizes = [8, 32], strides = [1, 1]} : vector<8x128xf32> to vector<8x32xf32>
    %145 = vector.extract_strided_slice %142 {offsets = [0, 32], sizes = [8, 32], strides = [1, 1]} : vector<8x128xf32> to vector<8x32xf32>
    %146 = vector.extract_strided_slice %143 {offsets = [0, 64], sizes = [8, 32], strides = [1, 1]} : vector<8x128xf32> to vector<8x32xf32>
    %147 = vector.extract_strided_slice %142 {offsets = [0, 96], sizes = [8, 32], strides = [1, 1]} : vector<8x128xf32> to vector<8x32xf32>
    %148 = arith.mulf %145, %121 : vector<8x32xf32>
    %149 = arith.mulf %144, %146 : vector<8x32xf32>
    %150 = arith.addf %148, %149 : vector<8x32xf32>
    %151 = math.tanh %150 : vector<8x32xf32>
    %152 = arith.mulf %147, %151 : vector<8x32xf32>
    %153 = arith.index_cast %130 : i32 to index
    %c0_52 = arith.constant 0 : index
    %c0_53 = arith.constant 0 : index
    %154 = vector.load %arg8[%153, %c0_52, %c0_53] : memref<8x8x32xf32, #tpu.memory_space<vmem>>, vector<1x8x32xf32>
    %155 = vector.shape_cast %154 : vector<1x8x32xf32> to vector<8x32xf32>
    %156 = vector.shape_cast %152 : vector<8x32xf32> to vector<1x8x32xf32>
    tpu.vector_store %arg8[%153, %c0_52, %c0_53], %156 {strides = array<i32>} : memref<8x8x32xf32, #tpu.memory_space<vmem>>, vector<1x8x32xf32>,
    %c5_i32 = arith.constant 5 : i32
    %c0_i32_54 = arith.constant 0 : i32
    %157 = arith.cmpi eq, %arg0, %c0_i32_54 : i32
    %c7_i32_55 = arith.constant 7 : i32
    %158 = arith.subi %c7_i32_55, %c5_i32 : i32
    %159 = arith.select %157, %c5_i32, %158 : i32
    %160 = arith.index_cast %159 : i32 to index
    %c0_56 = arith.constant 0 : index
    %c0_57 = arith.constant 0 : index
    %161 = vector.load %arg7[%160, %c0_56, %c0_57] : memref<8x8x128xf32, #tpu.memory_space<vmem>>, vector<1x8x128xf32>
    %162 = vector.shape_cast %161 : vector<1x8x128xf32> to vector<8x128xf32>
    %cst_58 = arith.constant dense<0.000000e+00> : vector<8x128xf32>
    %163 = tpu.matmul %152, %7, %cst_58 {dimension_numbers = #tpu.dot_dimension_numbers<[1], [0], [0], [1], [0, 0, 1, 1], [], []>} : vector<8x32xf32>, vector<32x128xf32>, vector<8x128xf32> -> vector<8x128xf32>
    %164 = arith.addf %162, %163 : vector<8x128xf32>
    %165 = vector.broadcast %9 : vector<1x128xf32> to vector<8x128xf32>
    %166 = arith.addf %164, %165 : vector<8x128xf32>
    %167 = arith.negf %166 : vector<8x128xf32>
    %168 = math.exp %167 : vector<8x128xf32>
    %cst_59 = arith.constant 1.000000e+00 : f32
    %169 = vector.broadcast %cst_59 : f32 to vector<8x128xf32>
    %170 = arith.addf %169, %168 : vector<8x128xf32>
    %171 = arith.divf %169, %170 : vector<8x128xf32>
    %172 = math.tanh %166 : vector<8x128xf32>
    %173 = vector.extract_strided_slice %171 {offsets = [0, 0], sizes = [8, 32], strides = [1, 1]} : vector<8x128xf32> to vector<8x32xf32>
    %174 = vector.extract_strided_slice %171 {offsets = [0, 32], sizes = [8, 32], strides = [1, 1]} : vector<8x128xf32> to vector<8x32xf32>
    %175 = vector.extract_strided_slice %172 {offsets = [0, 64], sizes = [8, 32], strides = [1, 1]} : vector<8x128xf32> to vector<8x32xf32>
    %176 = vector.extract_strided_slice %171 {offsets = [0, 96], sizes = [8, 32], strides = [1, 1]} : vector<8x128xf32> to vector<8x32xf32>
    %177 = arith.mulf %174, %150 : vector<8x32xf32>
    %178 = arith.mulf %173, %175 : vector<8x32xf32>
    %179 = arith.addf %177, %178 : vector<8x32xf32>
    %180 = math.tanh %179 : vector<8x32xf32>
    %181 = arith.mulf %176, %180 : vector<8x32xf32>
    %182 = arith.index_cast %159 : i32 to index
    %c0_60 = arith.constant 0 : index
    %c0_61 = arith.constant 0 : index
    %183 = vector.load %arg8[%182, %c0_60, %c0_61] : memref<8x8x32xf32, #tpu.memory_space<vmem>>, vector<1x8x32xf32>
    %184 = vector.shape_cast %183 : vector<1x8x32xf32> to vector<8x32xf32>
    %185 = vector.shape_cast %181 : vector<8x32xf32> to vector<1x8x32xf32>
    tpu.vector_store %arg8[%182, %c0_60, %c0_61], %185 {strides = array<i32>} : memref<8x8x32xf32, #tpu.memory_space<vmem>>, vector<1x8x32xf32>,
    %c6_i32 = arith.constant 6 : i32
    %c0_i32_62 = arith.constant 0 : i32
    %186 = arith.cmpi eq, %arg0, %c0_i32_62 : i32
    %c7_i32_63 = arith.constant 7 : i32
    %187 = arith.subi %c7_i32_63, %c6_i32 : i32
    %188 = arith.select %186, %c6_i32, %187 : i32
    %189 = arith.index_cast %188 : i32 to index
    %c0_64 = arith.constant 0 : index
    %c0_65 = arith.constant 0 : index
    %190 = vector.load %arg7[%189, %c0_64, %c0_65] : memref<8x8x128xf32, #tpu.memory_space<vmem>>, vector<1x8x128xf32>
    %191 = vector.shape_cast %190 : vector<1x8x128xf32> to vector<8x128xf32>
    %cst_66 = arith.constant dense<0.000000e+00> : vector<8x128xf32>
    %192 = tpu.matmul %181, %7, %cst_66 {dimension_numbers = #tpu.dot_dimension_numbers<[1], [0], [0], [1], [0, 0, 1, 1], [], []>} : vector<8x32xf32>, vector<32x128xf32>, vector<8x128xf32> -> vector<8x128xf32>
    %193 = arith.addf %191, %192 : vector<8x128xf32>
    %194 = vector.broadcast %9 : vector<1x128xf32> to vector<8x128xf32>
    %195 = arith.addf %193, %194 : vector<8x128xf32>
    %196 = arith.negf %195 : vector<8x128xf32>
    %197 = math.exp %196 : vector<8x128xf32>
    %cst_67 = arith.constant 1.000000e+00 : f32
    %198 = vector.broadcast %cst_67 : f32 to vector<8x128xf32>
    %199 = arith.addf %198, %197 : vector<8x128xf32>
    %200 = arith.divf %198, %199 : vector<8x128xf32>
    %201 = math.tanh %195 : vector<8x128xf32>
    %202 = vector.extract_strided_slice %200 {offsets = [0, 0], sizes = [8, 32], strides = [1, 1]} : vector<8x128xf32> to vector<8x32xf32>
    %203 = vector.extract_strided_slice %200 {offsets = [0, 32], sizes = [8, 32], strides = [1, 1]} : vector<8x128xf32> to vector<8x32xf32>
    %204 = vector.extract_strided_slice %201 {offsets = [0, 64], sizes = [8, 32], strides = [1, 1]} : vector<8x128xf32> to vector<8x32xf32>
    %205 = vector.extract_strided_slice %200 {offsets = [0, 96], sizes = [8, 32], strides = [1, 1]} : vector<8x128xf32> to vector<8x32xf32>
    %206 = arith.mulf %203, %179 : vector<8x32xf32>
    %207 = arith.mulf %202, %204 : vector<8x32xf32>
    %208 = arith.addf %206, %207 : vector<8x32xf32>
    %209 = math.tanh %208 : vector<8x32xf32>
    %210 = arith.mulf %205, %209 : vector<8x32xf32>
    %211 = arith.index_cast %188 : i32 to index
    %c0_68 = arith.constant 0 : index
    %c0_69 = arith.constant 0 : index
    %212 = vector.load %arg8[%211, %c0_68, %c0_69] : memref<8x8x32xf32, #tpu.memory_space<vmem>>, vector<1x8x32xf32>
    %213 = vector.shape_cast %212 : vector<1x8x32xf32> to vector<8x32xf32>
    %214 = vector.shape_cast %210 : vector<8x32xf32> to vector<1x8x32xf32>
    tpu.vector_store %arg8[%211, %c0_68, %c0_69], %214 {strides = array<i32>} : memref<8x8x32xf32, #tpu.memory_space<vmem>>, vector<1x8x32xf32>,
    %c7_i32_70 = arith.constant 7 : i32
    %c0_i32_71 = arith.constant 0 : i32
    %215 = arith.cmpi eq, %arg0, %c0_i32_71 : i32
    %c7_i32_72 = arith.constant 7 : i32
    %216 = arith.subi %c7_i32_72, %c7_i32_70 : i32
    %217 = arith.select %215, %c7_i32_70, %216 : i32
    %218 = arith.index_cast %217 : i32 to index
    %c0_73 = arith.constant 0 : index
    %c0_74 = arith.constant 0 : index
    %219 = vector.load %arg7[%218, %c0_73, %c0_74] : memref<8x8x128xf32, #tpu.memory_space<vmem>>, vector<1x8x128xf32>
    %220 = vector.shape_cast %219 : vector<1x8x128xf32> to vector<8x128xf32>
    %cst_75 = arith.constant dense<0.000000e+00> : vector<8x128xf32>
    %221 = tpu.matmul %210, %7, %cst_75 {dimension_numbers = #tpu.dot_dimension_numbers<[1], [0], [0], [1], [0, 0, 1, 1], [], []>} : vector<8x32xf32>, vector<32x128xf32>, vector<8x128xf32> -> vector<8x128xf32>
    %222 = arith.addf %220, %221 : vector<8x128xf32>
    %223 = vector.broadcast %9 : vector<1x128xf32> to vector<8x128xf32>
    %224 = arith.addf %222, %223 : vector<8x128xf32>
    %225 = arith.negf %224 : vector<8x128xf32>
    %226 = math.exp %225 : vector<8x128xf32>
    %cst_76 = arith.constant 1.000000e+00 : f32
    %227 = vector.broadcast %cst_76 : f32 to vector<8x128xf32>
    %228 = arith.addf %227, %226 : vector<8x128xf32>
    %229 = arith.divf %227, %228 : vector<8x128xf32>
    %230 = math.tanh %224 : vector<8x128xf32>
    %231 = vector.extract_strided_slice %229 {offsets = [0, 0], sizes = [8, 32], strides = [1, 1]} : vector<8x128xf32> to vector<8x32xf32>
    %232 = vector.extract_strided_slice %229 {offsets = [0, 32], sizes = [8, 32], strides = [1, 1]} : vector<8x128xf32> to vector<8x32xf32>
    %233 = vector.extract_strided_slice %230 {offsets = [0, 64], sizes = [8, 32], strides = [1, 1]} : vector<8x128xf32> to vector<8x32xf32>
    %234 = vector.extract_strided_slice %229 {offsets = [0, 96], sizes = [8, 32], strides = [1, 1]} : vector<8x128xf32> to vector<8x32xf32>
    %235 = arith.mulf %232, %208 : vector<8x32xf32>
    %236 = arith.mulf %231, %233 : vector<8x32xf32>
    %237 = arith.addf %235, %236 : vector<8x32xf32>
    %238 = math.tanh %237 : vector<8x32xf32>
    %239 = arith.mulf %234, %238 : vector<8x32xf32>
    %240 = arith.index_cast %217 : i32 to index
    %c0_77 = arith.constant 0 : index
    %c0_78 = arith.constant 0 : index
    %241 = vector.load %arg8[%240, %c0_77, %c0_78] : memref<8x8x32xf32, #tpu.memory_space<vmem>>, vector<1x8x32xf32>
    %242 = vector.shape_cast %241 : vector<1x8x32xf32> to vector<8x32xf32>
    %243 = vector.shape_cast %239 : vector<8x32xf32> to vector<1x8x32xf32>
    tpu.vector_store %arg8[%240, %c0_77, %c0_78], %243 {strides = array<i32>} : memref<8x8x32xf32, #tpu.memory_space<vmem>>, vector<1x8x32xf32>,
    %c8_i32 = arith.constant 8 : i32
    %c0_79 = arith.constant 0 : index
    %c0_80 = arith.constant 0 : index
    %c0_81 = arith.constant 0 : index
    %244 = vector.load %arg5[%c0_79, %c0_80, %c0_81] : memref<1x32x8xf32, #tpu.memory_space<vmem>>, vector<1x32x8xf32>
    %245 = vector.shape_cast %244 : vector<1x32x8xf32> to vector<32x8xf32>
    %c0_82 = arith.constant 0 : index
    %c0_83 = arith.constant 0 : index
    %c0_84 = arith.constant 0 : index
    %246 = vector.load %arg8[%c0_82, %c0_83, %c0_84] : memref<8x8x32xf32, #tpu.memory_space<vmem>>, vector<8x8x32xf32>
    %247 = vector.shape_cast %246 : vector<8x8x32xf32> to vector<64x32xf32>
    %cst_85 = arith.constant dense<0.000000e+00> : vector<64x8xf32>
    %248 = tpu.matmul %247, %245, %cst_85 {dimension_numbers = #tpu.dot_dimension_numbers<[1], [0], [0], [1], [0, 0, 1, 1], [], []>} : vector<64x32xf32>, vector<32x8xf32>, vector<64x8xf32> -> vector<64x8xf32>
    %249 = vector.shape_cast %248 : vector<64x8xf32> to vector<8x8x8xf32>
    %c0_86 = arith.constant 0 : index
    %c0_87 = arith.constant 0 : index
    %c0_88 = arith.constant 0 : index
    %c0_89 = arith.constant 0 : index
    %250 = vector.load %arg6[%c0_86, %c0_87, %c0_88, %c0_89] : memref<1x8x8x8xf32, #tpu.memory_space<vmem>>, vector<1x8x8x8xf32>
    %251 = vector.shape_cast %250 : vector<1x8x8x8xf32> to vector<8x8x8xf32>
    %252 = vector.shape_cast %249 : vector<8x8x8xf32> to vector<1x8x8x8xf32>
    tpu.vector_store %arg6[%c0_86, %c0_87, %c0_88, %c0_89], %252 {strides = array<i32>} : memref<1x8x8x8xf32, #tpu.memory_space<vmem>>, vector<1x8x8x8xf32>,
    return
  }
  func.func @transform_0(%arg0: i32) -> (i32, i32) {
    %c0_i32 = arith.constant 0 : i32
    %c0_i32_0 = arith.constant 0 : i32
    %c0_i32_1 = arith.constant 0 : i32
    return %c0_i32, %c0_i32_0 : i32, i32
  }
  func.func @transform_1(%arg0: i32) -> (i32, i32, i32) {
    %c0_i32 = arith.constant 0 : i32
    %c0_i32_0 = arith.constant 0 : i32
    %c0_i32_1 = arith.constant 0 : i32
    return %arg0, %c0_i32, %c0_i32_0 : i32, i32, i32
  }
  func.func @transform_2(%arg0: i32) -> (i32, i32, i32) {
    %c0_i32 = arith.constant 0 : i32
    %c0_i32_0 = arith.constant 0 : i32
    %c0_i32_1 = arith.constant 0 : i32
    return %arg0, %c0_i32, %c0_i32_0 : i32, i32, i32
  }
  func.func @transform_3(%arg0: i32) -> (i32, i32, i32) {
    %c0_i32 = arith.constant 0 : i32
    %c0_i32_0 = arith.constant 0 : i32
    %c0_i32_1 = arith.constant 0 : i32
    return %arg0, %c0_i32, %c0_i32_0 : i32, i32, i32
  }
  func.func @transform_4(%arg0: i32) -> (i32, i32, i32) {
    %c0_i32 = arith.constant 0 : i32
    %c0_i32_0 = arith.constant 0 : i32
    %c0_i32_1 = arith.constant 0 : i32
    return %arg0, %c0_i32, %c0_i32_0 : i32, i32, i32
  }
  func.func @transform_5(%arg0: i32) -> (i32, i32, i32, i32) {
    %c0_i32 = arith.constant 0 : i32
    %c0_i32_0 = arith.constant 0 : i32
    %c0_i32_1 = arith.constant 0 : i32
    %c0_i32_2 = arith.constant 0 : i32
    return %arg0, %c0_i32, %c0_i32_0, %c0_i32_1 : i32, i32, i32, i32
  }
}

</mosaic_0001>

<llo_original>
// kernel: tpu_custom_call.1
$region0: #{tpu_custom_call.1}
  #allocation0 [shape = 'u32[]', space=smem, size = 0x4, offset = 0x4, fixed_abs, tag = 'smem constant byte address 0x4 - core index']
  #allocation1 [shape = 'u32[144,128]{1,0:T(1,128)}', space=vmem, size = 0x12000, scoped, tag = 'internal scratch']
  #allocation2 [shape = 'f32[8,8,128]{2,1,0:T(8,128)}', space=vmem, size = 0x8000, scoped, tag = 'scratch operand']
  #allocation3 [shape = 'f32[8,8,32]{2,1,0:T(8,128)}', space=vmem, size = 0x8000, scoped, tag = 'scratch operand']
  %s0 = inlined_call_operand.vmem [shape: f32[64,32], index: 0, kind: input, shape index: {}]
  %s1 = inlined_call_operand.vmem [shape: f32[2,32,128], index: 1, kind: input, shape index: {}]
  %s2 = inlined_call_operand.vmem [shape: f32[2,32,128], index: 2, kind: input, shape index: {}]
  %s3 = inlined_call_operand.vmem [shape: f32[2,1,128], index: 3, kind: input, shape index: {}]
  %s4 = inlined_call_operand.vmem [shape: f32[2,32,8], index: 4, kind: input, shape index: {}]
  %s5 = inlined_call_operand.hbm [shape: f32[2,8,8,8], index: 5, kind: output, shape index: {}]
  %s6 = sld [smem:[#allocation0]]
  $region53: #{tpu_custom_call.1} parent=0
    _
  %s8 = ssub.s32 1, %s6
  %s9 = scalar_select 0, %s8, %s6
  $region1: #{tpu_custom_call.1} parent=0
    #allocation4 [shape = 'u8[65536]{0}', space=vmem, size = 0x10000, scoped, tag = 'output window, operand 0']
    #allocation5 [shape = 's32[2]{0}', space=sflag, size = 0x8, scoped, tag = 'scoped memory for tpu_custom_call.1']
    %10 = vsyncpa [#allocation5], 0
    %s11 = scalar_lea.sflag [#allocation5], 1
    %12 = vsyncpa %s11, 0
    loop: start=0, step=1, limit=4
    $region2: #{tpu_custom_call.1} parent=1 // loop_pre_header
      _
    $region3: #{tpu_custom_call.1} parent=1 // loop_header
      %s14 = sphi 0, %s18
      %p15 = scmp.ge.s32.totalorder %s14, 4
      %s22 = sphi 0, %s22
      %s24 = sphi 0, %s22
      %s25 = sphi 0, %s24
      %s39 = sphi 0, %s25
      %s45 = sphi 0, %s47
      %s48 = sphi 0, %s45
      %s49 = sphi 0, %s48
      %s65 = sphi 0, %s49
      %s71 = sphi 0, %s73
      %s74 = sphi 0, %s71
      %s75 = sphi 0, %s74
      %s91 = sphi 0, %s75
      %s97 = sphi 0, %s99
      %s100 = sphi 0, %s97
      %s101 = sphi 0, %s100
      %s117 = sphi 0, %s101
      %s123 = sphi 0, %s125
      %s126 = sphi 0, %s123
      %s127 = sphi 0, %s126
      %s143 = sphi 0, %s127
      %s149 = sphi 0, %s151
      %s152 = sphi 0, %s149
      %s153 = sphi 0, %s152
      %s169 = sphi 0, %s153
    $region4: #{tpu_custom_call.1} parent=1 // loop_header_branch
      %17 = sbr.rel (%p15) target = $region8
    $region5: #{tpu_custom_call.1} parent=1 // loop_body
      %s19 = ssub.s32 %s14, 1
      %s20 = ssub.s32 %s14, 2
      %s21 = sadd.s32 %s14, 1
      %s23 = sadd.s32 %s22, 1
      %p26 = scmp.eq.s32.totalorder %s14, 1
      %p27 = scmp.ne.s32.totalorder %s22, %s24
      %p28 = scmp.eq.s32.totalorder %s14, 0
      %p29 = por %p27, %p28
      %p30 = scmp.ne.s32.totalorder %s22, %s24
      %p31 = scmp.eq.s32.totalorder %s19, 1
      %p32 = por %p30, %p31
      %p33 = scmp.ne.s32.totalorder %s24, %s25
      %p34 = scmp.eq.s32.totalorder %s19, 0
      %p35 = por %p33, %p34
      %p36 = scmp.ne.s32.totalorder %s24, %s25
      %p37 = scmp.eq.s32.totalorder %s20, 1
      %p38 = por %p36, %p37
      %p40 = scmp.ne.s32.totalorder %s25, %s39
      %p41 = scmp.eq.s32.totalorder %s20, 0
      %p42 = por %p40, %p41
      %s43 = ssub.s32 %s14, %s21
      %p44 = scmp.eq.s32.totalorder %s43, 0
      %s46 = sadd.s32 %s45, 1
      %s47 = scalar_select %p44, %s45, %s46
      %p50 = pneg %p44
      %p51 = scmp.eq.s32.totalorder %s14, 1
      %p52 = por %p50, %p51
      %p53 = scmp.ne.s32.totalorder %s45, %s48
      %p54 = scmp.eq.s32.totalorder %s14, 0
      %p55 = por %p53, %p54
      %p56 = scmp.ne.s32.totalorder %s45, %s48
      %p57 = scmp.eq.s32.totalorder %s19, 1
      %p58 = por %p56, %p57
      %p59 = scmp.ne.s32.totalorder %s48, %s49
      %p60 = scmp.eq.s32.totalorder %s19, 0
      %p61 = por %p59, %p60
      %p62 = scmp.ne.s32.totalorder %s48, %s49
      %p63 = scmp.eq.s32.totalorder %s20, 1
      %p64 = por %p62, %p63
      %p66 = scmp.ne.s32.totalorder %s49, %s65
      %p67 = scmp.eq.s32.totalorder %s20, 0
      %p68 = por %p66, %p67
      %s69 = ssub.s32 %s14, %s21
      %p70 = scmp.eq.s32.totalorder %s69, 0
      %s72 = sadd.s32 %s71, 1
      %s73 = scalar_select %p70, %s71, %s72
      %p76 = pneg %p70
      %p77 = scmp.eq.s32.totalorder %s14, 1
      %p78 = por %p76, %p77
      %p79 = scmp.ne.s32.totalorder %s71, %s74
      %p80 = scmp.eq.s32.totalorder %s14, 0
      %p81 = por %p79, %p80
      %p82 = scmp.ne.s32.totalorder %s71, %s74
      %p83 = scmp.eq.s32.totalorder %s19, 1
      %p84 = por %p82, %p83
      %p85 = scmp.ne.s32.totalorder %s74, %s75
      %p86 = scmp.eq.s32.totalorder %s19, 0
      %p87 = por %p85, %p86
      %p88 = scmp.ne.s32.totalorder %s74, %s75
      %p89 = scmp.eq.s32.totalorder %s20, 1
      %p90 = por %p88, %p89
      %p92 = scmp.ne.s32.totalorder %s75, %s91
      %p93 = scmp.eq.s32.totalorder %s20, 0
      %p94 = por %p92, %p93
      %s95 = ssub.s32 %s14, %s21
      %p96 = scmp.eq.s32.totalorder %s95, 0
      %s98 = sadd.s32 %s97, 1
      %s99 = scalar_select %p96, %s97, %s98
      %p102 = pneg %p96
      %p103 = scmp.eq.s32.totalorder %s14, 1
      %p104 = por %p102, %p103
      %p105 = scmp.ne.s32.totalorder %s97, %s100
      %p106 = scmp.eq.s32.totalorder %s14, 0
      %p107 = por %p105, %p106
      %p108 = scmp.ne.s32.totalorder %s97, %s100
      %p109 = scmp.eq.s32.totalorder %s19, 1
      %p110 = por %p108, %p109
      %p111 = scmp.ne.s32.totalorder %s100, %s101
      %p112 = scmp.eq.s32.totalorder %s19, 0
      %p113 = por %p111, %p112
      %p114 = scmp.ne.s32.totalorder %s100, %s101
      %p115 = scmp.eq.s32.totalorder %s20, 1
      %p116 = por %p114, %p115
      %p118 = scmp.ne.s32.totalorder %s101, %s117
      %p119 = scmp.eq.s32.totalorder %s20, 0
      %p120 = por %p118, %p119
      %s121 = ssub.s32 %s14, %s21
      %p122 = scmp.eq.s32.totalorder %s121, 0
      %s124 = sadd.s32 %s123, 1
      %s125 = scalar_select %p122, %s123, %s124
      %p128 = pneg %p122
      %p129 = scmp.eq.s32.totalorder %s14, 1
      %p130 = por %p128, %p129
      %p131 = scmp.ne.s32.totalorder %s123, %s126
      %p132 = scmp.eq.s32.totalorder %s14, 0
      %p133 = por %p131, %p132
      %p134 = scmp.ne.s32.totalorder %s123, %s126
      %p135 = scmp.eq.s32.totalorder %s19, 1
      %p136 = por %p134, %p135
      %p137 = scmp.ne.s32.totalorder %s126, %s127
      %p138 = scmp.eq.s32.totalorder %s19, 0
      %p139 = por %p137, %p138
      %p140 = scmp.ne.s32.totalorder %s126, %s127
      %p141 = scmp.eq.s32.totalorder %s20, 1
      %p142 = por %p140, %p141
      %p144 = scmp.ne.s32.totalorder %s127, %s143
      %p145 = scmp.eq.s32.totalorder %s20, 0
      %p146 = por %p144, %p145
      %s147 = ssub.s32 %s14, %s21
      %p148 = scmp.eq.s32.totalorder %s147, 0
      %s150 = sadd.s32 %s149, 1
      %s151 = scalar_select %p148, %s149, %s150
      %p154 = pneg %p148
      %p155 = scmp.eq.s32.totalorder %s14, 1
      %p156 = por %p154, %p155
      %p157 = scmp.ne.s32.totalorder %s149, %s152
      %p158 = scmp.eq.s32.totalorder %s14, 0
      %p159 = por %p157, %p158
      %p160 = scmp.ne.s32.totalorder %s149, %s152
      %p161 = scmp.eq.s32.totalorder %s19, 1
      %p162 = por %p160, %p161
      %p163 = scmp.ne.s32.totalorder %s152, %s153
      %p164 = scmp.eq.s32.totalorder %s19, 0
      %p165 = por %p163, %p164
      %p166 = scmp.ne.s32.totalorder %s152, %s153
      %p167 = scmp.eq.s32.totalorder %s20, 1
      %p168 = por %p166, %p167
      %p170 = scmp.ne.s32.totalorder %s153, %s169
      %p171 = scmp.eq.s32.totalorder %s20, 0
      %p172 = por %p170, %p171
      %p173 = scmp.le.s32.totalorder 1, %s14
      %p174 = scmp.lt.s32.totalorder %s14, 3
      %p175 = pnand %p173, %p174
      %p176 = pneg %p175
      // Predicated region
      $region9: #{tpu_custom_call.1} parent=5 // pred_check
        _
      $region10: #{tpu_custom_call.1} parent=5 // pred_check_branch
        %178 = sbr.rel (%p175) target = $region12
      $region11: #{tpu_custom_call.1} parent=5 // pred_region
        %s179 = ssub.s32 %s14, 1
        // Predicated region
        $region13: #{tpu_custom_call.1} parent=11 // pred_check
          %p180 = pneg %p35
        $region14: #{tpu_custom_call.1} parent=11 // pred_check_branch
          %182 = sbr.rel (%p180) target = $region16
        $region15: #{tpu_custom_call.1} parent=11 // pred_region
          _
        $region16: #{tpu_custom_call.1} parent=11 // pred_fallthru
          _
      $region12: #{tpu_custom_call.1} parent=5 // pred_fallthru
        _
      %p183 = scmp.lt.s32.totalorder %s14, 2
      // Predicated region
      $region17: #{tpu_custom_call.1} parent=5 // pred_check
        %p184 = pneg %p183
      $region18: #{tpu_custom_call.1} parent=5 // pred_check_branch
        %186 = sbr.rel (%p184) target = $region20
      $region19: #{tpu_custom_call.1} parent=5 // pred_region
        // Predicated region
        $region21: #{tpu_custom_call.1} parent=19 // pred_check
          %p187 = pneg %p55
        $region22: #{tpu_custom_call.1} parent=19 // pred_check_branch
          %189 = sbr.rel (%p187) target = $region24
        $region23: #{tpu_custom_call.1} parent=19 // pred_region
          %p190 = scmp.lt.s32.totalorder %s14, 1
          %s191 = scalar_select %p190, %s14, 1
          %s192 = smul.addr %s191, 4
          %s193 = smul.addr %s192, 8
          %s194 = scalar_lea.vmem %s1, %s193
        $region24: #{tpu_custom_call.1} parent=19 // pred_fallthru
          _
        // Predicated region
        $region25: #{tpu_custom_call.1} parent=19 // pred_check
          %p195 = pneg %p81
        $region26: #{tpu_custom_call.1} parent=19 // pred_check_branch
          %197 = sbr.rel (%p195) target = $region28
        $region27: #{tpu_custom_call.1} parent=19 // pred_region
          %p198 = scmp.lt.s32.totalorder %s14, 1
          %s199 = scalar_select %p198, %s14, 1
          %s200 = smul.addr %s199, 4
          %s201 = smul.addr %s200, 8
          %s202 = scalar_lea.vmem %s2, %s201
        $region28: #{tpu_custom_call.1} parent=19 // pred_fallthru
          _
        // Predicated region
        $region29: #{tpu_custom_call.1} parent=19 // pred_check
          %p203 = pneg %p107
        $region30: #{tpu_custom_call.1} parent=19 // pred_check_branch
          %205 = sbr.rel (%p203) target = $region32
        $region31: #{tpu_custom_call.1} parent=19 // pred_region
          %p206 = scmp.lt.s32.totalorder %s14, 1
          %s207 = scalar_select %p206, %s14, 1
          %s208 = scalar_lea.vmem %s3, %s207
        $region32: #{tpu_custom_call.1} parent=19 // pred_fallthru
          _
        // Predicated region
        $region33: #{tpu_custom_call.1} parent=19 // pred_check
          %p209 = pneg %p133
        $region34: #{tpu_custom_call.1} parent=19 // pred_check_branch
          %211 = sbr.rel (%p209) target = $region36
        $region35: #{tpu_custom_call.1} parent=19 // pred_region
          %p212 = scmp.lt.s32.totalorder %s14, 1
          %s213 = scalar_select %p212, %s14, 1
          %s214 = smul.addr %s213, 4
          %s215 = smul.addr %s214, 8
          %s216 = scalar_lea.vmem %s4, %s215
        $region36: #{tpu_custom_call.1} parent=19 // pred_fallthru
          _
      $region20: #{tpu_custom_call.1} parent=5 // pred_fallthru
        _
      %p217 = scmp.le.s32.totalorder 1, %s14
      %p218 = scmp.lt.s32.totalorder %s14, 3
      %p219 = pnand %p217, %p218
      %p220 = pneg %p219
      // Predicated region
      $region37: #{tpu_custom_call.1} parent=5 // pred_check
        _
      $region38: #{tpu_custom_call.1} parent=5 // pred_check_branch
        %222 = sbr.rel (%p219) target = $region40
      $region39: #{tpu_custom_call.1} parent=5 // pred_region
        %s223 = ssub.s32 %s14, 1
        %p224 = pneg %p35
        %p225 = pneg %p32
        %p226 = scmp.lt.s32.totalorder %s19, 1
        %s227 = scalar_select %p226, %s19, 1
        %s228 = smul.addr %s227, 4
        %s229 = smul.addr %s228, 8
        %s230 = scalar_lea.vmem %s1, %s229
        %p231 = pneg %p61
        %p232 = pneg %p58
        %p233 = scmp.lt.s32.totalorder %s19, 1
        %s234 = scalar_select %p233, %s19, 1
        %s235 = smul.addr %s234, 4
        %s236 = smul.addr %s235, 8
        %s237 = scalar_lea.vmem %s2, %s236
        %p238 = pneg %p87
        %p239 = pneg %p84
        %p240 = scmp.lt.s32.totalorder %s19, 1
        %s241 = scalar_select %p240, %s19, 1
        %s242 = scalar_lea.vmem %s3, %s241
        %p243 = pneg %p113
        %p244 = pneg %p110
        %p245 = scmp.lt.s32.totalorder %s19, 1
        %s246 = scalar_select %p245, %s19, 1
        %s247 = smul.addr %s246, 4
        %s248 = smul.addr %s247, 8
        %s249 = scalar_lea.vmem %s4, %s248
        %p250 = pneg %p139
        %p251 = pneg %p136
        %p252 = pneg %p165
        %p253 = pneg %p162
        %s254 = sand.u32 %s152, 1
        %s255 = scalar_lea.sflag [#allocation5], %s254
        %s256 = sand.u32 %s152, 1
        %s257 = smul.addr %s256, 64
        %s258 = scalar_lea.vmem [#allocation4], %s257
        %p259 = scmp.lt.s32.totalorder %s19, 1
        %s260 = scalar_select %p259, %s19, 1
        %s261 = smul.addr %s260, 4
        %s262 = smul.addr %s261, 8
        %s263 = scalar_lea.vmem %s1, %s262
        %p264 = scmp.lt.s32.totalorder %s19, 1
        %s265 = scalar_select %p264, %s19, 1
        %s266 = smul.addr %s265, 4
        %s267 = smul.addr %s266, 8
        %s268 = scalar_lea.vmem %s2, %s267
        %p269 = scmp.lt.s32.totalorder %s19, 1
        %s270 = scalar_select %p269, %s19, 1
        %s271 = scalar_lea.vmem %s3, %s270
        %p272 = scmp.lt.s32.totalorder %s19, 1
        %s273 = scalar_select %p272, %s19, 1
        %s274 = smul.addr %s273, 4
        %s275 = smul.addr %s274, 8
        %s276 = scalar_lea.vmem %s4, %s275
        %v277 = vld [vmem:[%s263] sm:$0xff]
        %v278 = vld [vmem:[%s263 + $0x8] sm:$0xff]
        %v279 = vld [vmem:[%s263 + $0x10] sm:$0xff]
        %v280 = vld [vmem:[%s263 + $0x18] sm:$0xff]
        %v281 = vld [vmem:[%s0] sm:$0xff]
        %v282 = vld [vmem:[%s0 + $0x8] sm:$0xff]
        %v283 = vld [vmem:[%s0 + $0x10] sm:$0xff]
        %v284 = vld [vmem:[%s0 + $0x18] sm:$0xff]
        %v285 = vld [vmem:[%s0 + $0x20] sm:$0xff]
        %v286 = vld [vmem:[%s0 + $0x28] sm:$0xff]
        %v287 = vld [vmem:[%s0 + $0x30] sm:$0xff]
        %v288 = vld [vmem:[%s0 + $0x38] sm:$0xff]
        %vm289 = vcmask 261120
        %v291 = vsel %vm289, %v281, 0
        %v294 = vsel %vm289, %v282, 0
        %v297 = vsel %vm289, %v283, 0
        %v300 = vsel %vm289, %v284, 0
        %v303 = vsel %vm289, %v285, 0
        %v306 = vsel %vm289, %v286, 0
        %v309 = vsel %vm289, %v287, 0
        %v312 = vsel %vm289, %v288, 0
        %314 = vmatprep.subr.mxu0 0.0
        %315 = vmatpush1.msra.mxu0 0.0
        %316 = vmatprep.subr.mxu0 0.0
        %317 = vmatpush1.msra.mxu0 0.0
        %318 = vmatprep.subr.mxu0 0.0
        %319 = vmatpush1.msra.mxu0 0.0
        %320 = vmatprep.subr.mxu0 0.0
        %321 = vmatpush1.msra.mxu0 0.0
        %322 = vmatprep.subr.mxu0 0.0
        %323 = vmatpush1.msra.mxu0 0.0
        %324 = vmatprep.subr.mxu0 0.0
        %325 = vmatpush1.msra.mxu0 0.0
        %326 = vmatprep.subr.mxu0 0.0
        %327 = vmatpush1.msra.mxu0 0.0
        %328 = vmatprep.subr.mxu0 0.0
        %329 = vmatpush1.msra.mxu0 0.0
        %330 = vmatprep.subr.mxu0 0.0
        %331 = vmatpush1.msra.mxu0 0.0
        %332 = vmatprep.subr.mxu0 0.0
        %333 = vmatpush1.msra.mxu0 0.0
        %334 = vmatprep.subr.mxu0 0.0
        %335 = vmatpush1.msra.mxu0 0.0
        %336 = vmatprep.subr.mxu0 0.0
        %337 = vmatpush1.msra.mxu0 0.0
        %338 = vmatprep.subr.mxu0 0.0
        %339 = vmatpush1.msra.mxu0 %v280
        %340 = vmatprep.subr.mxu0 0.0
        %341 = vmatpush1.msra.mxu0 %v279
        %342 = vmatprep.subr.mxu0 0.0
        %343 = vmatpush1.msra.mxu0 %v278
        %344 = vmatprep.subr.mxu0 0.0
        %345 = vmatpush1.msra.mxu0 %v277
        %346 = vmatprep.subr.mxu0 0.0
        %347 = vmatpush2.msra.mxu0 0.0
        %348 = vmatprep.subr.mxu0 0.0
        %349 = vmatpush2.msra.mxu0 0.0
        %350 = vmatprep.subr.mxu0 0.0
        %351 = vmatpush2.msra.mxu0 0.0
        %352 = vmatprep.subr.mxu0 0.0
        %353 = vmatpush2.msra.mxu0 0.0
        %354 = vmatprep.subr.mxu0 0.0
        %355 = vmatpush2.msra.mxu0 0.0
        %356 = vmatprep.subr.mxu0 0.0
        %357 = vmatpush2.msra.mxu0 0.0
        %358 = vmatprep.subr.mxu0 0.0
        %359 = vmatpush2.msra.mxu0 0.0
        %360 = vmatprep.subr.mxu0 0.0
        %361 = vmatpush2.msra.mxu0 0.0
        %362 = vmatprep.subr.mxu0 0.0
        %363 = vmatpush2.msra.mxu0 0.0
        %364 = vmatprep.subr.mxu0 0.0
        %365 = vmatpush2.msra.mxu0 0.0
        %366 = vmatprep.subr.mxu0 0.0
        %367 = vmatpush2.msra.mxu0 0.0
        %368 = vmatprep.subr.mxu0 0.0
        %369 = vmatpush2.msra.mxu0 0.0
        %370 = vmatprep.subr.mxu0 0.0
        %371 = vmatpush2.msra.mxu0 0.0
        %372 = vmatprep.subr.mxu0 0.0
        %373 = vmatpush2.msra.mxu0 0.0
        %374 = vmatprep.subr.mxu0 0.0
        %375 = vmatpush2.msra.mxu0 0.0
        %376 = vmatprep.subr.mxu0 0.0
        %377 = vmatpush2.msra.mxu0 0.0
        %378 = vmatprep.mubr.f32.mxu0 0.0
        %379 = vmatmul.mubr.f32.gmra.mxu0 %v291
        %v380 = vpop.f32.mrf.mxu0
        %v381 = vadd.f32 0.0, %v380
        %v382 = vpop.f32.mrf.mxu0
        %383 = vmatprep.mubr.f32.mxu0 0.0
        %384 = vmatmul.mubr.f32.gmra.mxu0 %v294
        %v385 = vpop.f32.mrf.mxu0
        %v386 = vadd.f32 0.0, %v385
        %v387 = vpop.f32.mrf.mxu0
        %388 = vmatprep.mubr.f32.mxu0 0.0
        %389 = vmatmul.mubr.f32.gmra.mxu0 %v297
        %v390 = vpop.f32.mrf.mxu0
        %v391 = vadd.f32 0.0, %v390
        %v392 = vpop.f32.mrf.mxu0
        %393 = vmatprep.mubr.f32.mxu0 0.0
        %394 = vmatmul.mubr.f32.gmra.mxu0 %v300
        %v395 = vpop.f32.mrf.mxu0
        %v396 = vadd.f32 0.0, %v395
        %v397 = vpop.f32.mrf.mxu0
        %398 = vmatprep.mubr.f32.mxu0 0.0
        %399 = vmatmul.mubr.f32.gmra.mxu0 %v303
        %v400 = vpop.f32.mrf.mxu0
        %v401 = vadd.f32 0.0, %v400
        %v402 = vpop.f32.mrf.mxu0
        %403 = vmatprep.mubr.f32.mxu0 0.0
        %404 = vmatmul.mubr.f32.gmra.mxu0 %v306
        %v405 = vpop.f32.mrf.mxu0
        %v406 = vadd.f32 0.0, %v405
        %v407 = vpop.f32.mrf.mxu0
        %408 = vmatprep.mubr.f32.mxu0 0.0
        %409 = vmatmul.mubr.f32.gmra.mxu0 %v309
        %v410 = vpop.f32.mrf.mxu0
        %v411 = vadd.f32 0.0, %v410
        %v412 = vpop.f32.mrf.mxu0
        %413 = vmatprep.mubr.f32.mxu0 0.0
        %414 = vmatmul.mubr.f32.gmra.mxu0 %v312
        %v415 = vpop.f32.mrf.mxu0
        %v416 = vadd.f32 0.0, %v415
        %v417 = vpop.f32.mrf.mxu0
        %418 = vdwg.mxu0
        %419 = vst [vmem:[#allocation2] sm:$0xff] %v381
        %420 = vst [vmem:[#allocation2 + $0x8] sm:$0xff] %v386
        %421 = vst [vmem:[#allocation2 + $0x10] sm:$0xff] %v391
        %422 = vst [vmem:[#allocation2 + $0x18] sm:$0xff] %v396
        %423 = vst [vmem:[#allocation2 + $0x20] sm:$0xff] %v401
        %424 = vst [vmem:[#allocation2 + $0x28] sm:$0xff] %v406
        %425 = vst [vmem:[#allocation2 + $0x30] sm:$0xff] %v411
        %426 = vst [vmem:[#allocation2 + $0x38] sm:$0xff] %v416
        %v427 = vld [vmem:[%s268] sm:$0xff]
        %v428 = vld [vmem:[%s268 + $0x8] sm:$0xff]
        %v429 = vld [vmem:[%s268 + $0x10] sm:$0xff]
        %v430 = vld [vmem:[%s268 + $0x18] sm:$0xff]
        %v431 = vld [vmem:[%s271] sm:$0x1]
        %p432 = scmp.eq.s32.totalorder %s19, 0
        %s433 = scalar_select %p432, 0, 7
        %s434 = smul.u32 %s433, 8
        %s435 = scalar_lea.vmem [#allocation2], %s434
        %v436 = vld [vmem:[%s435] sm:$0xff]
        %v438 = vsel %vm289, 0.0, 0
        %440 = vmatprep.subr.mxu0 0.0
        %441 = vmatpush1.msra.mxu0 0.0
        %442 = vmatprep.subr.mxu0 0.0
        %443 = vmatpush1.msra.mxu0 0.0
        %444 = vmatprep.subr.mxu0 0.0
        %445 = vmatpush1.msra.mxu0 0.0
        %446 = vmatprep.subr.mxu0 0.0
        %447 = vmatpush1.msra.mxu0 0.0
        %448 = vmatprep.subr.mxu0 0.0
        %449 = vmatpush1.msra.mxu0 0.0
        %450 = vmatprep.subr.mxu0 0.0
        %451 = vmatpush1.msra.mxu0 0.0
        %452 = vmatprep.subr.mxu0 0.0
        %453 = vmatpush1.msra.mxu0 0.0
        %454 = vmatprep.subr.mxu0 0.0
        %455 = vmatpush1.msra.mxu0 0.0
        %456 = vmatprep.subr.mxu0 0.0
        %457 = vmatpush1.msra.mxu0 0.0
        %458 = vmatprep.subr.mxu0 0.0
        %459 = vmatpush1.msra.mxu0 0.0
        %460 = vmatprep.subr.mxu0 0.0
        %461 = vmatpush1.msra.mxu0 0.0
        %462 = vmatprep.subr.mxu0 0.0
        %463 = vmatpush1.msra.mxu0 0.0
        %464 = vmatprep.subr.mxu0 0.0
        %465 = vmatpush1.msra.mxu0 %v430
        %466 = vmatprep.subr.mxu0 0.0
        %467 = vmatpush1.msra.mxu0 %v429
        %468 = vmatprep.subr.mxu0 0.0
        %469 = vmatpush1.msra.mxu0 %v428
        %470 = vmatprep.subr.mxu0 0.0
        %471 = vmatpush1.msra.mxu0 %v427
        %472 = vmatprep.subr.mxu0 0.0
        %473 = vmatpush2.msra.mxu0 0.0
        %474 = vmatprep.subr.mxu0 0.0
        %475 = vmatpush2.msra.mxu0 0.0
        %476 = vmatprep.subr.mxu0 0.0
        %477 = vmatpush2.msra.mxu0 0.0
        %478 = vmatprep.subr.mxu0 0.0
        %479 = vmatpush2.msra.mxu0 0.0
        %480 = vmatprep.subr.mxu0 0.0
        %481 = vmatpush2.msra.mxu0 0.0
        %482 = vmatprep.subr.mxu0 0.0
        %483 = vmatpush2.msra.mxu0 0.0
        %484 = vmatprep.subr.mxu0 0.0
        %485 = vmatpush2.msra.mxu0 0.0
        %486 = vmatprep.subr.mxu0 0.0
        %487 = vmatpush2.msra.mxu0 0.0
        %488 = vmatprep.subr.mxu0 0.0
        %489 = vmatpush2.msra.mxu0 0.0
        %490 = vmatprep.subr.mxu0 0.0
        %491 = vmatpush2.msra.mxu0 0.0
        %492 = vmatprep.subr.mxu0 0.0
        %493 = vmatpush2.msra.mxu0 0.0
        %494 = vmatprep.subr.mxu0 0.0
        %495 = vmatpush2.msra.mxu0 0.0
        %496 = vmatprep.subr.mxu0 0.0
        %497 = vmatpush2.msra.mxu0 0.0
        %498 = vmatprep.subr.mxu0 0.0
        %499 = vmatpush2.msra.mxu0 0.0
        %500 = vmatprep.subr.mxu0 0.0
        %501 = vmatpush2.msra.mxu0 0.0
        %502 = vmatprep.subr.mxu0 0.0
        %503 = vmatpush2.msra.mxu0 0.0
        %504 = vmatprep.mubr.f32.mxu0 0.0
        %505 = vmatmul.mubr.f32.gmra.mxu0 %v438
        %v506 = vpop.f32.mrf.mxu0
        %v507 = vadd.f32 0.0, %v506
        %v508 = vpop.f32.mrf.mxu0
        %509 = vdwg.mxu0
        %v510 = vadd.f32 %v436, %v507
        %v512 = vlaneseq
        %v513 = vshrl.u32 %v512, 7
        %v514 = vsub.s32 0, %v513
        %v515 = vrot.slane %v431, %v514
        %v517 = vadd.f32 %v510, %v515
        %v518 = vxor.u32 %v517, 2147483648
        %v519 = vmul.f32 %v518, 1.442695
        %v520 = vpow.pop %v519
        %v521 = vadd.f32 %v520, 1.0
        %v522 = vrcp.pop %v521
        %v523 = vmul.f32 1.0, %v522
        %v524 = vtanh.pop %v517
        %v525 = vmul.f32 %v523, 0.0
        %527 = vrot.lane.b32.xlu0 %v524, 64
        %v528 = vpop.permute.xlu0 %527
        %v530 = vmul.f32 %v523, %v528
        %532 = vrot.lane.b32.xlu0 %v530, 32
        %v533 = vpop.permute.xlu0 %532
        %v535 = vadd.f32 %v525, %v533
        %v536 = vtanh.pop %v535
        %538 = vrot.lane.b32.xlu0 %v536, 64
        %v539 = vpop.permute.xlu0 %538
        %v541 = vmul.f32 %v523, %v539
        %543 = vrot.lane.b32.xlu0 %v541, 32
        %v544 = vpop.permute.xlu0 %543
        %s546 = scalar_lea.vmem [#allocation3], %s434
        %547 = vst.msk [vmem:[%s546] sm:$0xff] %vm289, %v544
        %s548 = scalar_select %p432, 1, 6
        %s549 = smul.u32 %s548, 8
        %s550 = scalar_lea.vmem [#allocation2], %s549
        %v551 = vld [vmem:[%s550] sm:$0xff]
        %v552 = vsel %vm289, %v544, 0
        %554 = vmatprep.subr.mxu0 0.0
        %555 = vmatpush1.msra.mxu0 0.0
        %556 = vmatprep.subr.mxu0 0.0
        %557 = vmatpush1.msra.mxu0 0.0
        %558 = vmatprep.subr.mxu0 0.0
        %559 = vmatpush1.msra.mxu0 0.0
        %560 = vmatprep.subr.mxu0 0.0
        %561 = vmatpush1.msra.mxu0 0.0
        %562 = vmatprep.subr.mxu0 0.0
        %563 = vmatpush1.msra.mxu0 0.0
        %564 = vmatprep.subr.mxu0 0.0
        %565 = vmatpush1.msra.mxu0 0.0
        %566 = vmatprep.subr.mxu0 0.0
        %567 = vmatpush1.msra.mxu0 0.0
        %568 = vmatprep.subr.mxu0 0.0
        %569 = vmatpush1.msra.mxu0 0.0
        %570 = vmatprep.subr.mxu0 0.0
        %571 = vmatpush1.msra.mxu0 0.0
        %572 = vmatprep.subr.mxu0 0.0
        %573 = vmatpush1.msra.mxu0 0.0
        %574 = vmatprep.subr.mxu0 0.0
        %575 = vmatpush1.msra.mxu0 0.0
        %576 = vmatprep.subr.mxu0 0.0
        %577 = vmatpush1.msra.mxu0 0.0
        %578 = vmatprep.subr.mxu0 0.0
        %579 = vmatpush1.msra.mxu0 %v430
        %580 = vmatprep.subr.mxu0 0.0
        %581 = vmatpush1.msra.mxu0 %v429
        %582 = vmatprep.subr.mxu0 0.0
        %583 = vmatpush1.msra.mxu0 %v428
        %584 = vmatprep.subr.mxu0 0.0
        %585 = vmatpush1.msra.mxu0 %v427
        %586 = vmatprep.subr.mxu0 0.0
        %587 = vmatpush2.msra.mxu0 0.0
        %588 = vmatprep.subr.mxu0 0.0
        %589 = vmatpush2.msra.mxu0 0.0
        %590 = vmatprep.subr.mxu0 0.0
        %591 = vmatpush2.msra.mxu0 0.0
        %592 = vmatprep.subr.mxu0 0.0
        %593 = vmatpush2.msra.mxu0 0.0
        %594 = vmatprep.subr.mxu0 0.0
        %595 = vmatpush2.msra.mxu0 0.0
        %596 = vmatprep.subr.mxu0 0.0
        %597 = vmatpush2.msra.mxu0 0.0
        %598 = vmatprep.subr.mxu0 0.0
        %599 = vmatpush2.msra.mxu0 0.0
        %600 = vmatprep.subr.mxu0 0.0
        %601 = vmatpush2.msra.mxu0 0.0
        %602 = vmatprep.subr.mxu0 0.0
        %603 = vmatpush2.msra.mxu0 0.0
        %604 = vmatprep.subr.mxu0 0.0
        %605 = vmatpush2.msra.mxu0 0.0
        %606 = vmatprep.subr.mxu0 0.0
        %607 = vmatpush2.msra.mxu0 0.0
        %608 = vmatprep.subr.mxu0 0.0
        %609 = vmatpush2.msra.mxu0 0.0
        %610 = vmatprep.subr.mxu0 0.0
        %611 = vmatpush2.msra.mxu0 0.0
        %612 = vmatprep.subr.mxu0 0.0
        %613 = vmatpush2.msra.mxu0 0.0
        %614 = vmatprep.subr.mxu0 0.0
        %615 = vmatpush2.msra.mxu0 0.0
        %616 = vmatprep.subr.mxu0 0.0
        %617 = vmatpush2.msra.mxu0 0.0
        %618 = vmatprep.mubr.f32.mxu0 0.0
        %619 = vmatmul.mubr.f32.gmra.mxu0 %v552
        %v620 = vpop.f32.mrf.mxu0
        %v621 = vadd.f32 0.0, %v620
        %v622 = vpop.f32.mrf.mxu0
        %623 = vdwg.mxu0
        %v624 = vadd.f32 %v551, %v621
        %v625 = vadd.f32 %v624, %v515
        %v626 = vxor.u32 %v625, 2147483648
        %v627 = vmul.f32 %v626, 1.442695
        %v628 = vpow.pop %v627
        %v629 = vadd.f32 %v628, 1.0
        %v630 = vrcp.pop %v629
        %v631 = vmul.f32 1.0, %v630
        %v632 = vtanh.pop %v625
        %v633 = vmul.f32 %v631, %v535
        %635 = vrot.lane.b32.xlu0 %v632, 64
        %v636 = vpop.permute.xlu0 %635
        %v638 = vmul.f32 %v631, %v636
        %640 = vrot.lane.b32.xlu0 %v638, 32
        %v641 = vpop.permute.xlu0 %640
        %v643 = vadd.f32 %v633, %v641
        %v644 = vtanh.pop %v643
        %646 = vrot.lane.b32.xlu0 %v644, 64
        %v647 = vpop.permute.xlu0 %646
        %v649 = vmul.f32 %v631, %v647
        %651 = vrot.lane.b32.xlu0 %v649, 32
        %v652 = vpop.permute.xlu0 %651
        %s654 = scalar_lea.vmem [#allocation3], %s549
        %655 = vst.msk [vmem:[%s654] sm:$0xff] %vm289, %v652
        %s656 = scalar_select %p432, 2, 5
        %s657 = smul.u32 %s656, 8
        %s658 = scalar_lea.vmem [#allocation2], %s657
        %v659 = vld [vmem:[%s658] sm:$0xff]
        %v660 = vsel %vm289, %v652, 0
        %662 = vmatprep.subr.mxu0 0.0
        %663 = vmatpush1.msra.mxu0 0.0
        %664 = vmatprep.subr.mxu0 0.0
        %665 = vmatpush1.msra.mxu0 0.0
        %666 = vmatprep.subr.mxu0 0.0
        %667 = vmatpush1.msra.mxu0 0.0
        %668 = vmatprep.subr.mxu0 0.0
        %669 = vmatpush1.msra.mxu0 0.0
        %670 = vmatprep.subr.mxu0 0.0
        %671 = vmatpush1.msra.mxu0 0.0
        %672 = vmatprep.subr.mxu0 0.0
        %673 = vmatpush1.msra.mxu0 0.0
        %674 = vmatprep.subr.mxu0 0.0
        %675 = vmatpush1.msra.mxu0 0.0
        %676 = vmatprep.subr.mxu0 0.0
        %677 = vmatpush1.msra.mxu0 0.0
        %678 = vmatprep.subr.mxu0 0.0
        %679 = vmatpush1.msra.mxu0 0.0
        %680 = vmatprep.subr.mxu0 0.0
        %681 = vmatpush1.msra.mxu0 0.0
        %682 = vmatprep.subr.mxu0 0.0
        %683 = vmatpush1.msra.mxu0 0.0
        %684 = vmatprep.subr.mxu0 0.0
        %685 = vmatpush1.msra.mxu0 0.0
        %686 = vmatprep.subr.mxu0 0.0
        %687 = vmatpush1.msra.mxu0 %v430
        %688 = vmatprep.subr.mxu0 0.0
        %689 = vmatpush1.msra.mxu0 %v429
        %690 = vmatprep.subr.mxu0 0.0
        %691 = vmatpush1.msra.mxu0 %v428
        %692 = vmatprep.subr.mxu0 0.0
        %693 = vmatpush1.msra.mxu0 %v427
        %694 = vmatprep.subr.mxu0 0.0
        %695 = vmatpush2.msra.mxu0 0.0
        %696 = vmatprep.subr.mxu0 0.0
        %697 = vmatpush2.msra.mxu0 0.0
        %698 = vmatprep.subr.mxu0 0.0
        %699 = vmatpush2.msra.mxu0 0.0
        %700 = vmatprep.subr.mxu0 0.0
        %701 = vmatpush2.msra.mxu0 0.0
        %702 = vmatprep.subr.mxu0 0.0
        %703 = vmatpush2.msra.mxu0 0.0
        %704 = vmatprep.subr.mxu0 0.0
        %705 = vmatpush2.msra.mxu0 0.0
        %706 = vmatprep.subr.mxu0 0.0
        %707 = vmatpush2.msra.mxu0 0.0
        %708 = vmatprep.subr.mxu0 0.0
        %709 = vmatpush2.msra.mxu0 0.0
        %710 = vmatprep.subr.mxu0 0.0
        %711 = vmatpush2.msra.mxu0 0.0
        %712 = vmatprep.subr.mxu0 0.0
        %713 = vmatpush2.msra.mxu0 0.0
        %714 = vmatprep.subr.mxu0 0.0
        %715 = vmatpush2.msra.mxu0 0.0
        %716 = vmatprep.subr.mxu0 0.0
        %717 = vmatpush2.msra.mxu0 0.0
        %718 = vmatprep.subr.mxu0 0.0
        %719 = vmatpush2.msra.mxu0 0.0
        %720 = vmatprep.subr.mxu0 0.0
        %721 = vmatpush2.msra.mxu0 0.0
        %722 = vmatprep.subr.mxu0 0.0
        %723 = vmatpush2.msra.mxu0 0.0
        %724 = vmatprep.subr.mxu0 0.0
        %725 = vmatpush2.msra.mxu0 0.0
        %726 = vmatprep.mubr.f32.mxu0 0.0
        %727 = vmatmul.mubr.f32.gmra.mxu0 %v660
        %v728 = vpop.f32.mrf.mxu0
        %v729 = vadd.f32 0.0, %v728
        %v730 = vpop.f32.mrf.mxu0
        %731 = vdwg.mxu0
        %v732 = vadd.f32 %v659, %v729
        %v733 = vadd.f32 %v732, %v515
        %v734 = vxor.u32 %v733, 2147483648
        %v735 = vmul.f32 %v734, 1.442695
        %v736 = vpow.pop %v735
        %v737 = vadd.f32 %v736, 1.0
        %v738 = vrcp.pop %v737
        %v739 = vmul.f32 1.0, %v738
        %v740 = vtanh.pop %v733
        %v741 = vmul.f32 %v739, %v643
        %743 = vrot.lane.b32.xlu0 %v740, 64
        %v744 = vpop.permute.xlu0 %743
        %v746 = vmul.f32 %v739, %v744
        %748 = vrot.lane.b32.xlu0 %v746, 32
        %v749 = vpop.permute.xlu0 %748
        %v751 = vadd.f32 %v741, %v749
        %v752 = vtanh.pop %v751
        %754 = vrot.lane.b32.xlu0 %v752, 64
        %v755 = vpop.permute.xlu0 %754
        %v757 = vmul.f32 %v739, %v755
        %759 = vrot.lane.b32.xlu0 %v757, 32
        %v760 = vpop.permute.xlu0 %759
        %s762 = scalar_lea.vmem [#allocation3], %s657
        %763 = vst.msk [vmem:[%s762] sm:$0xff] %vm289, %v760
        %s764 = scalar_select %p432, 3, 4
        %s765 = smul.u32 %s764, 8
        %s766 = scalar_lea.vmem [#allocation2], %s765
        %v767 = vld [vmem:[%s766] sm:$0xff]
        %v768 = vsel %vm289, %v760, 0
        %770 = vmatprep.subr.mxu0 0.0
        %771 = vmatpush1.msra.mxu0 0.0
        %772 = vmatprep.subr.mxu0 0.0
        %773 = vmatpush1.msra.mxu0 0.0
        %774 = vmatprep.subr.mxu0 0.0
        %775 = vmatpush1.msra.mxu0 0.0
        %776 = vmatprep.subr.mxu0 0.0
        %777 = vmatpush1.msra.mxu0 0.0
        %778 = vmatprep.subr.mxu0 0.0
        %779 = vmatpush1.msra.mxu0 0.0
        %780 = vmatprep.subr.mxu0 0.0
        %781 = vmatpush1.msra.mxu0 0.0
        %782 = vmatprep.subr.mxu0 0.0
        %783 = vmatpush1.msra.mxu0 0.0
        %784 = vmatprep.subr.mxu0 0.0
        %785 = vmatpush1.msra.mxu0 0.0
        %786 = vmatprep.subr.mxu0 0.0
        %787 = vmatpush1.msra.mxu0 0.0
        %788 = vmatprep.subr.mxu0 0.0
        %789 = vmatpush1.msra.mxu0 0.0
        %790 = vmatprep.subr.mxu0 0.0
        %791 = vmatpush1.msra.mxu0 0.0
        %792 = vmatprep.subr.mxu0 0.0
        %793 = vmatpush1.msra.mxu0 0.0
        %794 = vmatprep.subr.mxu0 0.0
        %795 = vmatpush1.msra.mxu0 %v430
        %796 = vmatprep.subr.mxu0 0.0
        %797 = vmatpush1.msra.mxu0 %v429
        %798 = vmatprep.subr.mxu0 0.0
        %799 = vmatpush1.msra.mxu0 %v428
        %800 = vmatprep.subr.mxu0 0.0
        %801 = vmatpush1.msra.mxu0 %v427
        %802 = vmatprep.subr.mxu0 0.0
        %803 = vmatpush2.msra.mxu0 0.0
        %804 = vmatprep.subr.mxu0 0.0
        %805 = vmatpush2.msra.mxu0 0.0
        %806 = vmatprep.subr.mxu0 0.0
        %807 = vmatpush2.msra.mxu0 0.0
        %808 = vmatprep.subr.mxu0 0.0
        %809 = vmatpush2.msra.mxu0 0.0
        %810 = vmatprep.subr.mxu0 0.0
        %811 = vmatpush2.msra.mxu0 0.0
        %812 = vmatprep.subr.mxu0 0.0
        %813 = vmatpush2.msra.mxu0 0.0
        %814 = vmatprep.subr.mxu0 0.0
        %815 = vmatpush2.msra.mxu0 0.0
        %816 = vmatprep.subr.mxu0 0.0
        %817 = vmatpush2.msra.mxu0 0.0
        %818 = vmatprep.subr.mxu0 0.0
        %819 = vmatpush2.msra.mxu0 0.0
        %820 = vmatprep.subr.mxu0 0.0
        %821 = vmatpush2.msra.mxu0 0.0
        %822 = vmatprep.subr.mxu0 0.0
        %823 = vmatpush2.msra.mxu0 0.0
        %824 = vmatprep.subr.mxu0 0.0
        %825 = vmatpush2.msra.mxu0 0.0
        %826 = vmatprep.subr.mxu0 0.0
        %827 = vmatpush2.msra.mxu0 0.0
        %828 = vmatprep.subr.mxu0 0.0
        %829 = vmatpush2.msra.mxu0 0.0
        %830 = vmatprep.subr.mxu0 0.0
        %831 = vmatpush2.msra.mxu0 0.0
        %832 = vmatprep.subr.mxu0 0.0
        %833 = vmatpush2.msra.mxu0 0.0
        %834 = vmatprep.mubr.f32.mxu0 0.0
        %835 = vmatmul.mubr.f32.gmra.mxu0 %v768
        %v836 = vpop.f32.mrf.mxu0
        %v837 = vadd.f32 0.0, %v836
        %v838 = vpop.f32.mrf.mxu0
        %839 = vdwg.mxu0
        %v840 = vadd.f32 %v767, %v837
        %v841 = vadd.f32 %v840, %v515
        %v842 = vxor.u32 %v841, 2147483648
        %v843 = vmul.f32 %v842, 1.442695
        %v844 = vpow.pop %v843
        %v845 = vadd.f32 %v844, 1.0
        %v846 = vrcp.pop %v845
        %v847 = vmul.f32 1.0, %v846
        %v848 = vtanh.pop %v841
        %v849 = vmul.f32 %v847, %v751
        %851 = vrot.lane.b32.xlu0 %v848, 64
        %v852 = vpop.permute.xlu0 %851
        %v854 = vmul.f32 %v847, %v852
        %856 = vrot.lane.b32.xlu0 %v854, 32
        %v857 = vpop.permute.xlu0 %856
        %v859 = vadd.f32 %v849, %v857
        %v860 = vtanh.pop %v859
        %862 = vrot.lane.b32.xlu0 %v860, 64
        %v863 = vpop.permute.xlu0 %862
        %v865 = vmul.f32 %v847, %v863
        %867 = vrot.lane.b32.xlu0 %v865, 32
        %v868 = vpop.permute.xlu0 %867
        %s870 = scalar_lea.vmem [#allocation3], %s765
        %871 = vst.msk [vmem:[%s870] sm:$0xff] %vm289, %v868
        %s872 = scalar_select %p432, 4, 3
        %s873 = smul.u32 %s872, 8
        %s874 = scalar_lea.vmem [#allocation2], %s873
        %v875 = vld [vmem:[%s874] sm:$0xff]
        %v876 = vsel %vm289, %v868, 0
        %878 = vmatprep.subr.mxu0 0.0
        %879 = vmatpush1.msra.mxu0 0.0
        %880 = vmatprep.subr.mxu0 0.0
        %881 = vmatpush1.msra.mxu0 0.0
        %882 = vmatprep.subr.mxu0 0.0
        %883 = vmatpush1.msra.mxu0 0.0
        %884 = vmatprep.subr.mxu0 0.0
        %885 = vmatpush1.msra.mxu0 0.0
        %886 = vmatprep.subr.mxu0 0.0
        %887 = vmatpush1.msra.mxu0 0.0
        %888 = vmatprep.subr.mxu0 0.0
        %889 = vmatpush1.msra.mxu0 0.0
        %890 = vmatprep.subr.mxu0 0.0
        %891 = vmatpush1.msra.mxu0 0.0
        %892 = vmatprep.subr.mxu0 0.0
        %893 = vmatpush1.msra.mxu0 0.0
        %894 = vmatprep.subr.mxu0 0.0
        %895 = vmatpush1.msra.mxu0 0.0
        %896 = vmatprep.subr.mxu0 0.0
        %897 = vmatpush1.msra.mxu0 0.0
        %898 = vmatprep.subr.mxu0 0.0
        %899 = vmatpush1.msra.mxu0 0.0
        %900 = vmatprep.subr.mxu0 0.0
        %901 = vmatpush1.msra.mxu0 0.0
        %902 = vmatprep.subr.mxu0 0.0
        %903 = vmatpush1.msra.mxu0 %v430
        %904 = vmatprep.subr.mxu0 0.0
        %905 = vmatpush1.msra.mxu0 %v429
        %906 = vmatprep.subr.mxu0 0.0
        %907 = vmatpush1.msra.mxu0 %v428
        %908 = vmatprep.subr.mxu0 0.0
        %909 = vmatpush1.msra.mxu0 %v427
        %910 = vmatprep.subr.mxu0 0.0
        %911 = vmatpush2.msra.mxu0 0.0
        %912 = vmatprep.subr.mxu0 0.0
        %913 = vmatpush2.msra.mxu0 0.0
        %914 = vmatprep.subr.mxu0 0.0
        %915 = vmatpush2.msra.mxu0 0.0
        %916 = vmatprep.subr.mxu0 0.0
        %917 = vmatpush2.msra.mxu0 0.0
        %918 = vmatprep.subr.mxu0 0.0
        %919 = vmatpush2.msra.mxu0 0.0
        %920 = vmatprep.subr.mxu0 0.0
        %921 = vmatpush2.msra.mxu0 0.0
        %922 = vmatprep.subr.mxu0 0.0
        %923 = vmatpush2.msra.mxu0 0.0
        %924 = vmatprep.subr.mxu0 0.0
        %925 = vmatpush2.msra.mxu0 0.0
        %926 = vmatprep.subr.mxu0 0.0
        %927 = vmatpush2.msra.mxu0 0.0
        %928 = vmatprep.subr.mxu0 0.0
        %929 = vmatpush2.msra.mxu0 0.0
        %930 = vmatprep.subr.mxu0 0.0
        %931 = vmatpush2.msra.mxu0 0.0
        %932 = vmatprep.subr.mxu0 0.0
        %933 = vmatpush2.msra.mxu0 0.0
        %934 = vmatprep.subr.mxu0 0.0
        %935 = vmatpush2.msra.mxu0 0.0
        %936 = vmatprep.subr.mxu0 0.0
        %937 = vmatpush2.msra.mxu0 0.0
        %938 = vmatprep.subr.mxu0 0.0
        %939 = vmatpush2.msra.mxu0 0.0
        %940 = vmatprep.subr.mxu0 0.0
        %941 = vmatpush2.msra.mxu0 0.0
        %942 = vmatprep.mubr.f32.mxu0 0.0
        %943 = vmatmul.mubr.f32.gmra.mxu0 %v876
        %v944 = vpop.f32.mrf.mxu0
        %v945 = vadd.f32 0.0, %v944
        %v946 = vpop.f32.mrf.mxu0
        %947 = vdwg.mxu0
        %v948 = vadd.f32 %v875, %v945
        %v949 = vadd.f32 %v948, %v515
        %v950 = vxor.u32 %v949, 2147483648
        %v951 = vmul.f32 %v950, 1.442695
        %v952 = vpow.pop %v951
        %v953 = vadd.f32 %v952, 1.0
        %v954 = vrcp.pop %v953
        %v955 = vmul.f32 1.0, %v954
        %v956 = vtanh.pop %v949
        %v957 = vmul.f32 %v955, %v859
        %959 = vrot.lane.b32.xlu0 %v956, 64
        %v960 = vpop.permute.xlu0 %959
        %v962 = vmul.f32 %v955, %v960
        %964 = vrot.lane.b32.xlu0 %v962, 32
        %v965 = vpop.permute.xlu0 %964
        %v967 = vadd.f32 %v957, %v965
        %v968 = vtanh.pop %v967
        %970 = vrot.lane.b32.xlu0 %v968, 64
        %v971 = vpop.permute.xlu0 %970
        %v973 = vmul.f32 %v955, %v971
        %975 = vrot.lane.b32.xlu0 %v973, 32
        %v976 = vpop.permute.xlu0 %975
        %s978 = scalar_lea.vmem [#allocation3], %s873
        %979 = vst.msk [vmem:[%s978] sm:$0xff] %vm289, %v976
        %s980 = scalar_select %p432, 5, 2
        %s981 = smul.u32 %s980, 8
        %s982 = scalar_lea.vmem [#allocation2], %s981
        %v983 = vld [vmem:[%s982] sm:$0xff]
        %v984 = vsel %vm289, %v976, 0
        %986 = vmatprep.subr.mxu0 0.0
        %987 = vmatpush1.msra.mxu0 0.0
        %988 = vmatprep.subr.mxu0 0.0
        %989 = vmatpush1.msra.mxu0 0.0
        %990 = vmatprep.subr.mxu0 0.0
        %991 = vmatpush1.msra.mxu0 0.0
        %992 = vmatprep.subr.mxu0 0.0
        %993 = vmatpush1.msra.mxu0 0.0
        %994 = vmatprep.subr.mxu0 0.0
        %995 = vmatpush1.msra.mxu0 0.0
        %996 = vmatprep.subr.mxu0 0.0
        %997 = vmatpush1.msra.mxu0 0.0
        %998 = vmatprep.subr.mxu0 0.0
        %999 = vmatpush1.msra.mxu0 0.0
        %1000 = vmatprep.subr.mxu0 0.0
        %1001 = vmatpush1.msra.mxu0 0.0
        %1002 = vmatprep.subr.mxu0 0.0
        %1003 = vmatpush1.msra.mxu0 0.0
        %1004 = vmatprep.subr.mxu0 0.0
        %1005 = vmatpush1.msra.mxu0 0.0
        %1006 = vmatprep.subr.mxu0 0.0
        %1007 = vmatpush1.msra.mxu0 0.0
        %1008 = vmatprep.subr.mxu0 0.0
        %1009 = vmatpush1.msra.mxu0 0.0
        %1010 = vmatprep.subr.mxu0 0.0
        %1011 = vmatpush1.msra.mxu0 %v430
        %1012 = vmatprep.subr.mxu0 0.0
        %1013 = vmatpush1.msra.mxu0 %v429
        %1014 = vmatprep.subr.mxu0 0.0
        %1015 = vmatpush1.msra.mxu0 %v428
        %1016 = vmatprep.subr.mxu0 0.0
        %1017 = vmatpush1.msra.mxu0 %v427
        %1018 = vmatprep.subr.mxu0 0.0
        %1019 = vmatpush2.msra.mxu0 0.0
        %1020 = vmatprep.subr.mxu0 0.0
        %1021 = vmatpush2.msra.mxu0 0.0
        %1022 = vmatprep.subr.mxu0 0.0
        %1023 = vmatpush2.msra.mxu0 0.0
        %1024 = vmatprep.subr.mxu0 0.0
        %1025 = vmatpush2.msra.mxu0 0.0
        %1026 = vmatprep.subr.mxu0 0.0
        %1027 = vmatpush2.msra.mxu0 0.0
        %1028 = vmatprep.subr.mxu0 0.0
        %1029 = vmatpush2.msra.mxu0 0.0
        %1030 = vmatprep.subr.mxu0 0.0
        %1031 = vmatpush2.msra.mxu0 0.0
        %1032 = vmatprep.subr.mxu0 0.0
        %1033 = vmatpush2.msra.mxu0 0.0
        %1034 = vmatprep.subr.mxu0 0.0
        %1035 = vmatpush2.msra.mxu0 0.0
        %1036 = vmatprep.subr.mxu0 0.0
        %1037 = vmatpush2.msra.mxu0 0.0
        %1038 = vmatprep.subr.mxu0 0.0
        %1039 = vmatpush2.msra.mxu0 0.0
        %1040 = vmatprep.subr.mxu0 0.0
        %1041 = vmatpush2.msra.mxu0 0.0
        %1042 = vmatprep.subr.mxu0 0.0
        %1043 = vmatpush2.msra.mxu0 0.0
        %1044 = vmatprep.subr.mxu0 0.0
        %1045 = vmatpush2.msra.mxu0 0.0
        %1046 = vmatprep.subr.mxu0 0.0
        %1047 = vmatpush2.msra.mxu0 0.0
        %1048 = vmatprep.subr.mxu0 0.0
        %1049 = vmatpush2.msra.mxu0 0.0
        %1050 = vmatprep.mubr.f32.mxu0 0.0
        %1051 = vmatmul.mubr.f32.gmra.mxu0 %v984
        %v1052 = vpop.f32.mrf.mxu0
        %v1053 = vadd.f32 0.0, %v1052
        %v1054 = vpop.f32.mrf.mxu0
        %1055 = vdwg.mxu0
        %v1056 = vadd.f32 %v983, %v1053
        %v1057 = vadd.f32 %v1056, %v515
        %v1058 = vxor.u32 %v1057, 2147483648
        %v1059 = vmul.f32 %v1058, 1.442695
        %v1060 = vpow.pop %v1059
        %v1061 = vadd.f32 %v1060, 1.0
        %v1062 = vrcp.pop %v1061
        %v1063 = vmul.f32 1.0, %v1062
        %v1064 = vtanh.pop %v1057
        %v1065 = vmul.f32 %v1063, %v967
        %1067 = vrot.lane.b32.xlu0 %v1064, 64
        %v1068 = vpop.permute.xlu0 %1067
        %v1070 = vmul.f32 %v1063, %v1068
        %1072 = vrot.lane.b32.xlu0 %v1070, 32
        %v1073 = vpop.permute.xlu0 %1072
        %v1075 = vadd.f32 %v1065, %v1073
        %v1076 = vtanh.pop %v1075
        %1078 = vrot.lane.b32.xlu0 %v1076, 64
        %v1079 = vpop.permute.xlu0 %1078
        %v1081 = vmul.f32 %v1063, %v1079
        %1083 = vrot.lane.b32.xlu0 %v1081, 32
        %v1084 = vpop.permute.xlu0 %1083
        %s1086 = scalar_lea.vmem [#allocation3], %s981
        %1087 = vst.msk [vmem:[%s1086] sm:$0xff] %vm289, %v1084
        %s1088 = scalar_select %p432, 6, 1
        %s1089 = smul.u32 %s1088, 8
        %s1090 = scalar_lea.vmem [#allocation2], %s1089
        %v1091 = vld [vmem:[%s1090] sm:$0xff]
        %v1092 = vsel %vm289, %v1084, 0
        %1094 = vmatprep.subr.mxu0 0.0
        %1095 = vmatpush1.msra.mxu0 0.0
        %1096 = vmatprep.subr.mxu0 0.0
        %1097 = vmatpush1.msra.mxu0 0.0
        %1098 = vmatprep.subr.mxu0 0.0
        %1099 = vmatpush1.msra.mxu0 0.0
        %1100 = vmatprep.subr.mxu0 0.0
        %1101 = vmatpush1.msra.mxu0 0.0
        %1102 = vmatprep.subr.mxu0 0.0
        %1103 = vmatpush1.msra.mxu0 0.0
        %1104 = vmatprep.subr.mxu0 0.0
        %1105 = vmatpush1.msra.mxu0 0.0
        %1106 = vmatprep.subr.mxu0 0.0
        %1107 = vmatpush1.msra.mxu0 0.0
        %1108 = vmatprep.subr.mxu0 0.0
        %1109 = vmatpush1.msra.mxu0 0.0
        %1110 = vmatprep.subr.mxu0 0.0
        %1111 = vmatpush1.msra.mxu0 0.0
        %1112 = vmatprep.subr.mxu0 0.0
        %1113 = vmatpush1.msra.mxu0 0.0
        %1114 = vmatprep.subr.mxu0 0.0
        %1115 = vmatpush1.msra.mxu0 0.0
        %1116 = vmatprep.subr.mxu0 0.0
        %1117 = vmatpush1.msra.mxu0 0.0
        %1118 = vmatprep.subr.mxu0 0.0
        %1119 = vmatpush1.msra.mxu0 %v430
        %1120 = vmatprep.subr.mxu0 0.0
        %1121 = vmatpush1.msra.mxu0 %v429
        %1122 = vmatprep.subr.mxu0 0.0
        %1123 = vmatpush1.msra.mxu0 %v428
        %1124 = vmatprep.subr.mxu0 0.0
        %1125 = vmatpush1.msra.mxu0 %v427
        %1126 = vmatprep.subr.mxu0 0.0
        %1127 = vmatpush2.msra.mxu0 0.0
        %1128 = vmatprep.subr.mxu0 0.0
        %1129 = vmatpush2.msra.mxu0 0.0
        %1130 = vmatprep.subr.mxu0 0.0
        %1131 = vmatpush2.msra.mxu0 0.0
        %1132 = vmatprep.subr.mxu0 0.0
        %1133 = vmatpush2.msra.mxu0 0.0
        %1134 = vmatprep.subr.mxu0 0.0
        %1135 = vmatpush2.msra.mxu0 0.0
        %1136 = vmatprep.subr.mxu0 0.0
        %1137 = vmatpush2.msra.mxu0 0.0
        %1138 = vmatprep.subr.mxu0 0.0
        %1139 = vmatpush2.msra.mxu0 0.0
        %1140 = vmatprep.subr.mxu0 0.0
        %1141 = vmatpush2.msra.mxu0 0.0
        %1142 = vmatprep.subr.mxu0 0.0
        %1143 = vmatpush2.msra.mxu0 0.0
        %1144 = vmatprep.subr.mxu0 0.0
        %1145 = vmatpush2.msra.mxu0 0.0
        %1146 = vmatprep.subr.mxu0 0.0
        %1147 = vmatpush2.msra.mxu0 0.0
        %1148 = vmatprep.subr.mxu0 0.0
        %1149 = vmatpush2.msra.mxu0 0.0
        %1150 = vmatprep.subr.mxu0 0.0
        %1151 = vmatpush2.msra.mxu0 0.0
        %1152 = vmatprep.subr.mxu0 0.0
        %1153 = vmatpush2.msra.mxu0 0.0
        %1154 = vmatprep.subr.mxu0 0.0
        %1155 = vmatpush2.msra.mxu0 0.0
        %1156 = vmatprep.subr.mxu0 0.0
        %1157 = vmatpush2.msra.mxu0 0.0
        %1158 = vmatprep.mubr.f32.mxu0 0.0
        %1159 = vmatmul.mubr.f32.gmra.mxu0 %v1092
        %v1160 = vpop.f32.mrf.mxu0
        %v1161 = vadd.f32 0.0, %v1160
        %v1162 = vpop.f32.mrf.mxu0
        %1163 = vdwg.mxu0
        %v1164 = vadd.f32 %v1091, %v1161
        %v1165 = vadd.f32 %v1164, %v515
        %v1166 = vxor.u32 %v1165, 2147483648
        %v1167 = vmul.f32 %v1166, 1.442695
        %v1168 = vpow.pop %v1167
        %v1169 = vadd.f32 %v1168, 1.0
        %v1170 = vrcp.pop %v1169
        %v1171 = vmul.f32 1.0, %v1170
        %v1172 = vtanh.pop %v1165
        %v1173 = vmul.f32 %v1171, %v1075
        %1175 = vrot.lane.b32.xlu0 %v1172, 64
        %v1176 = vpop.permute.xlu0 %1175
        %v1178 = vmul.f32 %v1171, %v1176
        %1180 = vrot.lane.b32.xlu0 %v1178, 32
        %v1181 = vpop.permute.xlu0 %1180
        %v1183 = vadd.f32 %v1173, %v1181
        %v1184 = vtanh.pop %v1183
        %1186 = vrot.lane.b32.xlu0 %v1184, 64
        %v1187 = vpop.permute.xlu0 %1186
        %v1189 = vmul.f32 %v1171, %v1187
        %1191 = vrot.lane.b32.xlu0 %v1189, 32
        %v1192 = vpop.permute.xlu0 %1191
        %s1194 = scalar_lea.vmem [#allocation3], %s1089
        %1195 = vst.msk [vmem:[%s1194] sm:$0xff] %vm289, %v1192
        %s1196 = scalar_select %p432, 7, 0
        %s1197 = smul.u32 %s1196, 8
        %s1198 = scalar_lea.vmem [#allocation2], %s1197
        %v1199 = vld [vmem:[%s1198] sm:$0xff]
        %v1200 = vsel %vm289, %v1192, 0
        %1202 = vmatprep.subr.mxu0 0.0
        %1203 = vmatpush1.msra.mxu0 0.0
        %1204 = vmatprep.subr.mxu0 0.0
        %1205 = vmatpush1.msra.mxu0 0.0
        %1206 = vmatprep.subr.mxu0 0.0
        %1207 = vmatpush1.msra.mxu0 0.0
        %1208 = vmatprep.subr.mxu0 0.0
        %1209 = vmatpush1.msra.mxu0 0.0
        %1210 = vmatprep.subr.mxu0 0.0
        %1211 = vmatpush1.msra.mxu0 0.0
        %1212 = vmatprep.subr.mxu0 0.0
        %1213 = vmatpush1.msra.mxu0 0.0
        %1214 = vmatprep.subr.mxu0 0.0
        %1215 = vmatpush1.msra.mxu0 0.0
        %1216 = vmatprep.subr.mxu0 0.0
        %1217 = vmatpush1.msra.mxu0 0.0
        %1218 = vmatprep.subr.mxu0 0.0
        %1219 = vmatpush1.msra.mxu0 0.0
        %1220 = vmatprep.subr.mxu0 0.0
        %1221 = vmatpush1.msra.mxu0 0.0
        %1222 = vmatprep.subr.mxu0 0.0
        %1223 = vmatpush1.msra.mxu0 0.0
        %1224 = vmatprep.subr.mxu0 0.0
        %1225 = vmatpush1.msra.mxu0 0.0
        %1226 = vmatprep.subr.mxu0 0.0
        %1227 = vmatpush1.msra.mxu0 %v430
        %1228 = vmatprep.subr.mxu0 0.0
        %1229 = vmatpush1.msra.mxu0 %v429
        %1230 = vmatprep.subr.mxu0 0.0
        %1231 = vmatpush1.msra.mxu0 %v428
        %1232 = vmatprep.subr.mxu0 0.0
        %1233 = vmatpush1.msra.mxu0 %v427
        %1234 = vmatprep.subr.mxu0 0.0
        %1235 = vmatpush2.msra.mxu0 0.0
        %1236 = vmatprep.subr.mxu0 0.0
        %1237 = vmatpush2.msra.mxu0 0.0
        %1238 = vmatprep.subr.mxu0 0.0
        %1239 = vmatpush2.msra.mxu0 0.0
        %1240 = vmatprep.subr.mxu0 0.0
        %1241 = vmatpush2.msra.mxu0 0.0
        %1242 = vmatprep.subr.mxu0 0.0
        %1243 = vmatpush2.msra.mxu0 0.0
        %1244 = vmatprep.subr.mxu0 0.0
        %1245 = vmatpush2.msra.mxu0 0.0
        %1246 = vmatprep.subr.mxu0 0.0
        %1247 = vmatpush2.msra.mxu0 0.0
        %1248 = vmatprep.subr.mxu0 0.0
        %1249 = vmatpush2.msra.mxu0 0.0
        %1250 = vmatprep.subr.mxu0 0.0
        %1251 = vmatpush2.msra.mxu0 0.0
        %1252 = vmatprep.subr.mxu0 0.0
        %1253 = vmatpush2.msra.mxu0 0.0
        %1254 = vmatprep.subr.mxu0 0.0
        %1255 = vmatpush2.msra.mxu0 0.0
        %1256 = vmatprep.subr.mxu0 0.0
        %1257 = vmatpush2.msra.mxu0 0.0
        %1258 = vmatprep.subr.mxu0 0.0
        %1259 = vmatpush2.msra.mxu0 0.0
        %1260 = vmatprep.subr.mxu0 0.0
        %1261 = vmatpush2.msra.mxu0 0.0
        %1262 = vmatprep.subr.mxu0 0.0
        %1263 = vmatpush2.msra.mxu0 0.0
        %1264 = vmatprep.subr.mxu0 0.0
        %1265 = vmatpush2.msra.mxu0 0.0
        %1266 = vmatprep.mubr.f32.mxu0 0.0
        %1267 = vmatmul.mubr.f32.gmra.mxu0 %v1200
        %v1268 = vpop.f32.mrf.mxu0
        %v1269 = vadd.f32 0.0, %v1268
        %v1270 = vpop.f32.mrf.mxu0
        %1271 = vdwg.mxu0
        %v1272 = vadd.f32 %v1199, %v1269
        %v1273 = vadd.f32 %v1272, %v515
        %v1274 = vxor.u32 %v1273, 2147483648
        %v1275 = vmul.f32 %v1274, 1.442695
        %v1276 = vpow.pop %v1275
        %v1277 = vadd.f32 %v1276, 1.0
        %v1278 = vrcp.pop %v1277
        %v1279 = vmul.f32 1.0, %v1278
        %v1280 = vtanh.pop %v1273
        %v1281 = vmul.f32 %v1279, %v1183
        %1283 = vrot.lane.b32.xlu0 %v1280, 64
        %v1284 = vpop.permute.xlu0 %1283
        %v1286 = vmul.f32 %v1279, %v1284
        %1288 = vrot.lane.b32.xlu0 %v1286, 32
        %v1289 = vpop.permute.xlu0 %1288
        %v1291 = vadd.f32 %v1281, %v1289
        %v1292 = vtanh.pop %v1291
        %1294 = vrot.lane.b32.xlu0 %v1292, 64
        %v1295 = vpop.permute.xlu0 %1294
        %v1297 = vmul.f32 %v1279, %v1295
        %1299 = vrot.lane.b32.xlu0 %v1297, 32
        %v1300 = vpop.permute.xlu0 %1299
        %s1302 = scalar_lea.vmem [#allocation3], %s1197
        %1303 = vst.msk [vmem:[%s1302] sm:$0xff] %vm289, %v1300
        %v1304 = vld [vmem:[%s276] sm:$0xff]
        %v1305 = vld [vmem:[%s276 + $0x8] sm:$0xff]
        %v1306 = vld [vmem:[%s276 + $0x10] sm:$0xff]
        %v1307 = vld [vmem:[%s276 + $0x18] sm:$0xff]
        %v1308 = vld [vmem:[#allocation3] sm:$0xff]
        %v1309 = vld [vmem:[#allocation3 + $0x8] sm:$0xff]
        %v1310 = vld [vmem:[#allocation3 + $0x10] sm:$0xff]
        %v1311 = vld [vmem:[#allocation3 + $0x18] sm:$0xff]
        %v1312 = vld [vmem:[#allocation3 + $0x20] sm:$0xff]
        %v1313 = vld [vmem:[#allocation3 + $0x28] sm:$0xff]
        %v1314 = vld [vmem:[#allocation3 + $0x30] sm:$0xff]
        %v1315 = vld [vmem:[#allocation3 + $0x38] sm:$0xff]
        %v1317 = vsel %vm289, %v1308, 0
        %v1320 = vsel %vm289, %v1309, 0
        %v1323 = vsel %vm289, %v1310, 0
        %v1326 = vsel %vm289, %v1311, 0
        %v1329 = vsel %vm289, %v1312, 0
        %v1332 = vsel %vm289, %v1313, 0
        %v1335 = vsel %vm289, %v1314, 0
        %v1338 = vsel %vm289, %v1315, 0
        %1340 = vmatprep.subr.mxu0 0.0
        %1341 = vmatpush1.msra.mxu0 0.0
        %1342 = vmatprep.subr.mxu0 0.0
        %1343 = vmatpush1.msra.mxu0 0.0
        %1344 = vmatprep.subr.mxu0 0.0
        %1345 = vmatpush1.msra.mxu0 0.0
        %1346 = vmatprep.subr.mxu0 0.0
        %1347 = vmatpush1.msra.mxu0 0.0
        %1348 = vmatprep.subr.mxu0 0.0
        %1349 = vmatpush1.msra.mxu0 0.0
        %1350 = vmatprep.subr.mxu0 0.0
        %1351 = vmatpush1.msra.mxu0 0.0
        %1352 = vmatprep.subr.mxu0 0.0
        %1353 = vmatpush1.msra.mxu0 0.0
        %1354 = vmatprep.subr.mxu0 0.0
        %1355 = vmatpush1.msra.mxu0 0.0
        %1356 = vmatprep.subr.mxu0 0.0
        %1357 = vmatpush1.msra.mxu0 0.0
        %1358 = vmatprep.subr.mxu0 0.0
        %1359 = vmatpush1.msra.mxu0 0.0
        %1360 = vmatprep.subr.mxu0 0.0
        %1361 = vmatpush1.msra.mxu0 0.0
        %1362 = vmatprep.subr.mxu0 0.0
        %1363 = vmatpush1.msra.mxu0 0.0
        %1364 = vmatprep.subr.mxu0 0.0
        %1365 = vmatpush1.msra.mxu0 %v1307
        %1366 = vmatprep.subr.mxu0 0.0
        %1367 = vmatpush1.msra.mxu0 %v1306
        %1368 = vmatprep.subr.mxu0 0.0
        %1369 = vmatpush1.msra.mxu0 %v1305
        %1370 = vmatprep.subr.mxu0 0.0
        %1371 = vmatpush1.msra.mxu0 %v1304
        %1372 = vmatprep.subr.mxu0 0.0
        %1373 = vmatpush2.msra.mxu0 0.0
        %1374 = vmatprep.subr.mxu0 0.0
        %1375 = vmatpush2.msra.mxu0 0.0
        %1376 = vmatprep.subr.mxu0 0.0
        %1377 = vmatpush2.msra.mxu0 0.0
        %1378 = vmatprep.subr.mxu0 0.0
        %1379 = vmatpush2.msra.mxu0 0.0
        %1380 = vmatprep.subr.mxu0 0.0
        %1381 = vmatpush2.msra.mxu0 0.0
        %1382 = vmatprep.subr.mxu0 0.0
        %1383 = vmatpush2.msra.mxu0 0.0
        %1384 = vmatprep.subr.mxu0 0.0
        %1385 = vmatpush2.msra.mxu0 0.0
        %1386 = vmatprep.subr.mxu0 0.0
        %1387 = vmatpush2.msra.mxu0 0.0
        %1388 = vmatprep.subr.mxu0 0.0
        %1389 = vmatpush2.msra.mxu0 0.0
        %1390 = vmatprep.subr.mxu0 0.0
        %1391 = vmatpush2.msra.mxu0 0.0
        %1392 = vmatprep.subr.mxu0 0.0
        %1393 = vmatpush2.msra.mxu0 0.0
        %1394 = vmatprep.subr.mxu0 0.0
        %1395 = vmatpush2.msra.mxu0 0.0
        %1396 = vmatprep.subr.mxu0 0.0
        %1397 = vmatpush2.msra.mxu0 0.0
        %1398 = vmatprep.subr.mxu0 0.0
        %1399 = vmatpush2.msra.mxu0 0.0
        %1400 = vmatprep.subr.mxu0 0.0
        %1401 = vmatpush2.msra.mxu0 0.0
        %1402 = vmatprep.subr.mxu0 0.0
        %1403 = vmatpush2.msra.mxu0 0.0
        %1404 = vmatprep.mubr.f32.mxu0 0.0
        %1405 = vmatmul.mubr.f32.gmra.mxu0 %v1317
        %v1406 = vpop.f32.mrf.mxu0
        %v1407 = vadd.f32 0.0, %v1406
        %v1408 = vpop.f32.mrf.mxu0
        %1409 = vmatprep.mubr.f32.mxu0 0.0
        %1410 = vmatmul.mubr.f32.gmra.mxu0 %v1320
        %v1411 = vpop.f32.mrf.mxu0
        %v1412 = vadd.f32 0.0, %v1411
        %v1413 = vpop.f32.mrf.mxu0
        %1414 = vmatprep.mubr.f32.mxu0 0.0
        %1415 = vmatmul.mubr.f32.gmra.mxu0 %v1323
        %v1416 = vpop.f32.mrf.mxu0
        %v1417 = vadd.f32 0.0, %v1416
        %v1418 = vpop.f32.mrf.mxu0
        %1419 = vmatprep.mubr.f32.mxu0 0.0
        %1420 = vmatmul.mubr.f32.gmra.mxu0 %v1326
        %v1421 = vpop.f32.mrf.mxu0
        %v1422 = vadd.f32 0.0, %v1421
        %v1423 = vpop.f32.mrf.mxu0
        %1424 = vmatprep.mubr.f32.mxu0 0.0
        %1425 = vmatmul.mubr.f32.gmra.mxu0 %v1329
        %v1426 = vpop.f32.mrf.mxu0
        %v1427 = vadd.f32 0.0, %v1426
        %v1428 = vpop.f32.mrf.mxu0
        %1429 = vmatprep.mubr.f32.mxu0 0.0
        %1430 = vmatmul.mubr.f32.gmra.mxu0 %v1332
        %v1431 = vpop.f32.mrf.mxu0
        %v1432 = vadd.f32 0.0, %v1431
        %v1433 = vpop.f32.mrf.mxu0
        %1434 = vmatprep.mubr.f32.mxu0 0.0
        %1435 = vmatmul.mubr.f32.gmra.mxu0 %v1335
        %v1436 = vpop.f32.mrf.mxu0
        %v1437 = vadd.f32 0.0, %v1436
        %v1438 = vpop.f32.mrf.mxu0
        %1439 = vmatprep.mubr.f32.mxu0 0.0
        %1440 = vmatmul.mubr.f32.gmra.mxu0 %v1338
        %v1441 = vpop.f32.mrf.mxu0
        %v1442 = vadd.f32 0.0, %v1441
        %v1443 = vpop.f32.mrf.mxu0
        %1444 = vdwg.mxu0
        %vm1445 = vcmask 64512
        %1446 = vst.msk [vmem:[%s258] sm:$0xff] %vm1445, %v1407
        %1447 = vst.msk [vmem:[%s258 + $0x8] sm:$0xff] %vm1445, %v1412
        %1448 = vst.msk [vmem:[%s258 + $0x10] sm:$0xff] %vm1445, %v1417
        %1449 = vst.msk [vmem:[%s258 + $0x18] sm:$0xff] %vm1445, %v1422
        %1450 = vst.msk [vmem:[%s258 + $0x20] sm:$0xff] %vm1445, %v1427
        %1451 = vst.msk [vmem:[%s258 + $0x28] sm:$0xff] %vm1445, %v1432
        %1452 = vst.msk [vmem:[%s258 + $0x30] sm:$0xff] %vm1445, %v1437
        %1453 = vst.msk [vmem:[%s258 + $0x38] sm:$0xff] %vm1445, %v1442
        %s1454 = sand.u32 %s152, 1
        %s1455 = scalar_lea.sflag [#allocation5], %s1454
        %s1456 = sand.u32 %s152, 1
        %s1457 = smul.addr %s1456, 64
        %s1458 = scalar_lea.vmem [#allocation4], %s1457
        // Predicated region
        $region41: #{tpu_custom_call.1} parent=39 // pred_check
          %p1459 = pneg %p162
        $region42: #{tpu_custom_call.1} parent=39 // pred_check_branch
          %1461 = sbr.rel (%p1459) target = $region44
        $region43: #{tpu_custom_call.1} parent=39 // pred_region
          %s1463 = ssub.s32 1024, 1024
          %1464 = vsyncadd %s1455, %s1463
          %s1465 = smul.addr %s19, 8
          %s1466 = smul.addr %s1465, 128
          %s1467 = scalar_lea.hbm %s5, %s1466
          %s1468 = sshll.u32 %s1458, 4
          %s1469 = int_to_ptr.vmem [resolvable:$true] %s1468
          %1474 = dma.vmem_to_hbm [thread:$0]  %s1469, 1024, %s1467, %s1455, 128, 128, 8
        $region44: #{tpu_custom_call.1} parent=39 // pred_fallthru
          _
      $region40: #{tpu_custom_call.1} parent=5 // pred_fallthru
        _
      %p1475 = scmp.le.s32.totalorder 2, %s14
      // Predicated region
      $region45: #{tpu_custom_call.1} parent=5 // pred_check
        %p1476 = pneg %p1475
      $region46: #{tpu_custom_call.1} parent=5 // pred_check_branch
        %1478 = sbr.rel (%p1476) target = $region48
      $region47: #{tpu_custom_call.1} parent=5 // pred_region
        %s1479 = ssub.s32 %s14, 2
        // Predicated region
        $region49: #{tpu_custom_call.1} parent=47 // pred_check
          %p1480 = pneg %p168
        $region50: #{tpu_custom_call.1} parent=47 // pred_check_branch
          %1482 = sbr.rel (%p1480) target = $region52
        $region51: #{tpu_custom_call.1} parent=47 // pred_region
          %s1483 = sand.u32 %s153, 1
          %s1484 = scalar_lea.sflag [#allocation5], %s1483
          %s1485 = sand.u32 %s153, 1
          %s1486 = smul.addr %s1485, 64
          %s1487 = scalar_lea.vmem [#allocation4], %s1486
          %1488 = dma.done %s1484, 1024
        $region52: #{tpu_custom_call.1} parent=47 // pred_fallthru
          _
      $region48: #{tpu_custom_call.1} parent=5 // pred_fallthru
        _
    $region6: #{tpu_custom_call.1} parent=1 // loop_footer
      %s18 = sadd.s32 1, %s14
    $region7: #{tpu_custom_call.1} parent=1 // loop_footer_branch
      %13 = sbr.rel target = $region3
    $region8: #{tpu_custom_call.1} parent=1 // loop_exit
      _
    %1489 = vsyncpa [#allocation5], 1
    %s1490 = scalar_lea.sflag [#allocation5], 1
    %1491 = vsyncpa %s1490, 1

</llo_original>
